<compile_context>
chip_gen: v7x
topology: tpu7x:2x2x1
jax: 0.10.0
libtpu: 0.0.40
codegen_flags: <defaults>
</compile_context>

<pallas_src>
import functools

import jax
import jax.numpy as jnp
from jax.experimental import pallas as pl
from jax.experimental.pallas import tpu as pltpu


def _cross_adapter_kernel(vq_ref, k_ref, v_ref, mask_ref,
                          wq_ref, bq_ref, wo_ref, bo_ref,
                          ln_g_ref, ln_b_ref,
                          out_ref,
                          *, num_heads, head_dim, mask_heads, eps):
    """One (batch, tgt-tile) step: q-proj -> per-head attention -> o-proj -> residual -> LN."""
    vq_f32 = vq_ref[0].astype(jnp.float32)            # (TQ, E), kept in f32 for the residual

    # q projection: bf16 operands on the MXU, f32 accumulation.
    # head_dim**-0.5 is folded into wq/bq on the host (no per-step VPU multiply).
    q = jnp.dot(vq_f32.astype(jnp.bfloat16), wq_ref[...],
                preferred_element_type=jnp.float32) + bq_ref[...]
    q_bf = q.astype(jnp.bfloat16)
    k_bf = k_ref[0]                                    # (S, E) bf16, projected on the host
    v_bf = v_ref[0]                                    # (S, E) bf16

    # Per-head attention on contiguous lane slices.  The o-projection is accumulated per
    # head (o_acc += ctx_h @ Wo[h]) so there is no (TQ, H, d) relayout / lane concat and
    # only one f32 (TQ, E) accumulator stays live.
    o_acc = jnp.zeros_like(q)
    # TODO(synk): for H >= 8 with head_dim % 128 == 0, switch this static loop to
    # lax.fori_loop(..., unroll=True) over pl.ds lane slices to bound live ranges.
    for h in range(num_heads):
        lo = h * head_dim
        hi = lo + head_dim
        qh = q_bf[:, lo:hi]                            # (TQ, d)
        kh = k_bf[:, lo:hi]                            # (S, d)
        vh = v_bf[:, lo:hi]                            # (S, d)

        sc = jax.lax.dot_general(qh, kh, (((1,), (1,)), ((), ())),
                                 preferred_element_type=jnp.float32)     # (TQ, S)
        m_idx = h if mask_heads == num_heads else 0
        sc = sc + mask_ref[0, m_idx].astype(jnp.float32)

        # Softmax stays in f32 on the VPU (v5e has no bf16 VPU/EUP).
        sc = sc - jnp.max(sc, axis=-1, keepdims=True)
        p = jnp.exp(sc)
        # approx reciprocal runs on the EUP slot; ~1e-3 relative error in the attn weights.
        p = p * pl.reciprocal(jnp.sum(p, axis=-1, keepdims=True), approx=True)
        # TODO(synk): attention dropout is identity (inference / attention_dropout == 0).

        ctx_h = jnp.dot(p.astype(jnp.bfloat16), vh,
                        preferred_element_type=jnp.float32)              # (TQ, d)
        o_acc = o_acc + jnp.dot(ctx_h.astype(jnp.bfloat16), wo_ref[lo:hi, :],
                                preferred_element_type=jnp.float32)      # (TQ, E)

    # Output-projection bias + residual + LayerNorm, all in f32.
    res = o_acc + bo_ref[...] + vq_f32
    mean = jnp.mean(res, axis=-1, keepdims=True)
    var = jnp.mean((res - mean) ** 2, axis=-1, keepdims=True)
    normed = (res - mean) * jax.lax.rsqrt(var + eps)
    out_ref[0] = (normed * ln_g_ref[...] + ln_b_ref[...]).astype(out_ref.dtype)


def _cdiv(a, b):
    return -(-a // b)


def _default_max_tile():
    """v7x has only 64 MiB VMEM per TensorCore -> keep tgt tiles at 256; v5e/v6e (128 MiB) -> 512."""
    try:
        return 256 if pltpu.get_tpu_info().vmem_capacity_bytes <= (96 << 20) else 512
    except Exception:
        return 512


def _tile_tgt(tgt_len, bsz, max_tile, row_align=16, min_grid_steps=2):
    """Pick (padded_tgt_len, tq).

    Pads the tgt axis on the host (instead of degrading to one giant block) when no
    aligned divisor exists, and when bsz == 1 still splits into >= 2 tiles so both v7x
    TensorCores get work.  row_align=16 keeps blocks legal for bf16-packed operands.
    """
    n_tiles = _cdiv(tgt_len, max_tile)
    if bsz * n_tiles < min_grid_steps and tgt_len > row_align:
        n_tiles = min_grid_steps
    if n_tiles <= 1:
        return tgt_len, tgt_len            # single full-extent block: always (8,128)-legal
    tq = _cdiv(_cdiv(tgt_len, n_tiles), row_align) * row_align
    padded = _cdiv(tgt_len, tq) * tq
    return padded, tq


def _derive_vmem_limit(tq, src_len, embed_dim, mask_heads, io_bytes):
    """Double-buffered streamed blocks + weight slabs + live f32 intermediates + headroom."""
    stream = 2 * (tq * embed_dim * io_bytes            # vision_query block
                  + tq * embed_dim * io_bytes          # output block
                  + 2 * src_len * embed_dim * 2        # k, v blocks (bf16)
                  + mask_heads * tq * src_len * 2)     # mask block (bf16)
    weights = 2 * (2 * embed_dim * embed_dim * 2       # wq, wo (bf16), double-buffered
                   + 4 * embed_dim * 4)                # bq, bo, ln_g, ln_b (f32)
    live = 3 * tq * embed_dim * 4 + 2 * tq * src_len * 4   # q, o_acc, res / scores, probs
    total = stream + weights + live + (8 << 20)             # compiler-scratch headroom
    return int(min(max(total, 32 << 20), 64 << 20))         # stay within v7x's 64 MiB/TC


def cross_adapter_t2i(vision_query, text_key, text_value, attention_mask,
                      params, num_heads, eps=1e-5, max_tile=None):
    bsz, tgt_len, embed_dim = vision_query.shape
    _, src_len, text_dim = text_key.shape
    assert embed_dim % num_heads == 0
    head_dim = embed_dim // num_heads
    scale = head_dim ** (-0.5)

    # Mask may be per-head (bsz, H, tgt, src) or head-broadcast (bsz, 1, tgt, src);
    # the broadcast form cuts mask HBM traffic by num_heads x.
    mask_heads = attention_mask.shape[1]
    assert mask_heads in (1, num_heads), attention_mask.shape
    assert attention_mask.shape == (bsz, mask_heads, tgt_len, src_len)

    to_bf16 = lambda w: w.astype(jnp.bfloat16)
    # PyTorch nn.Linear stores W as (out, in) and computes x @ W.T + b.
    # Fold head_dim**-0.5 into the q projection.
    wq = to_bf16(params['q_w'].T * scale)                     # (E, E)
    bq = (params['q_b'] * scale).reshape(1, embed_dim).astype(jnp.float32)
    wo = to_bf16(params['o_w'].T)                             # (E, E)
    bo = params['o_b'].reshape(1, embed_dim).astype(jnp.float32)
    ln_g = params['ln_g'].reshape(1, embed_dim).astype(jnp.float32)
    ln_b = params['ln_b'].reshape(1, embed_dim).astype(jnp.float32)

    # K/V projections depend only on the batch -> hoist them out of the tgt-tile loop:
    # one batched bf16 XLA matmul each (f32 accumulation), streamed into the kernel as
    # (S, E) bf16 blocks whose block index is constant across tgt tiles (stay resident).
    wk = to_bf16(params['k_w'].T)                             # (text_dim, E)
    wv = to_bf16(params['v_w'].T)
    k = (jnp.einsum('bst,te->bse', text_key.astype(jnp.bfloat16), wk,
                    preferred_element_type=jnp.float32)
         + params['k_b'].astype(jnp.float32)).astype(jnp.bfloat16)
    v = (jnp.einsum('bst,te->bse', text_value.astype(jnp.bfloat16), wv,
                    preferred_element_type=jnp.float32)
         + params['v_b'].astype(jnp.float32)).astype(jnp.bfloat16)

    # Additive mask streamed as bf16 (halves the dominant HBM stream); added in f32 in-kernel.
    mask = attention_mask.astype(jnp.bfloat16)

    if max_tile is None:
        max_tile = _default_max_tile()
    padded_tgt, tq = _tile_tgt(tgt_len, bsz, max_tile)
    if padded_tgt != tgt_len:
        pad = padded_tgt - tgt_len
        vision_query_p = jnp.pad(vision_query, ((0, 0), (0, pad), (0, 0)))
        mask = jnp.pad(mask, ((0, 0), (0, 0), (0, pad), (0, 0)))
    else:
        vision_query_p = vision_query
    n_tq = padded_tgt // tq

    kernel = functools.partial(_cross_adapter_kernel,
                               num_heads=num_heads, head_dim=head_dim,
                               mask_heads=mask_heads, eps=eps)

    full = lambda shape: pl.BlockSpec(shape, lambda b, t: (0,) * len(shape))
    # TODO(synk): on v7x, single-buffer these constant-index weight specs via
    # pipeline_mode=pl.Buffered(1) once that path is validated on the target jax version.

    io_bytes = jnp.dtype(vision_query.dtype).itemsize
    vmem_limit = _derive_vmem_limit(tq, src_len, embed_dim, mask_heads, io_bytes)

    out = pl.pallas_call(
        kernel,
        out_shape=jax.ShapeDtypeStruct((bsz, padded_tgt, embed_dim),
                                       vision_query.dtype),
        grid_spec=pltpu.PrefetchScalarGridSpec(
            num_scalar_prefetch=0,
            grid=(bsz, n_tq),
            in_specs=[
                pl.BlockSpec((1, tq, embed_dim), lambda b, t: (b, t, 0)),
                pl.BlockSpec((1, src_len, embed_dim), lambda b, t: (b, 0, 0)),
                pl.BlockSpec((1, src_len, embed_dim), lambda b, t: (b, 0, 0)),
                pl.BlockSpec((1, mask_heads, tq, src_len),
                             lambda b, t: (b, 0, t, 0)),
                full(wq.shape), full(bq.shape),
                full(wo.shape), full(bo.shape),
                full(ln_g.shape), full(ln_b.shape),
            ],
            out_specs=pl.BlockSpec((1, tq, embed_dim), lambda b, t: (b, t, 0)),
        ),
        compiler_params=pltpu.CompilerParams(
            dimension_semantics=("parallel", "parallel"),
            vmem_limit_bytes=vmem_limit),
    )(vision_query_p, k, v, mask,
      wq, bq, wo, bo, ln_g, ln_b)

    return out[:, :tgt_len] if padded_tgt != tgt_len else out


def _reference(vision_query, text_key, text_value, attention_mask,
               params, num_heads, eps=1e-5):
    """Pure-JAX reproduction of the PyTorch forward for verification."""
    bsz, tgt_len, embed_dim = vision_query.shape
    _, src_len, _ = text_key.shape
    head_dim = embed_dim // num_heads
    scale = head_dim ** (-0.5)
    q = (vision_query @ params['q_w'].T + params['q_b']) * scale
    k = text_key @ params['k_w'].T + params['k_b']
    v = text_value @ params['v_w'].T + params['v_b']
    shape = lambda x, L: x.reshape(bsz, L, num_heads, head_dim).transpose(0, 2, 1, 3)
    q, k, v = shape(q, tgt_len), shape(k, src_len), shape(v, src_len)
    w = jnp.einsum('bhtd,bhsd->bhts', q, k) + attention_mask
    w = jax.nn.softmax(w, axis=-1)
    o = jnp.einsum('bhts,bhsd->bhtd', w, v)
    o = o.transpose(0, 2, 1, 3).reshape(bsz, tgt_len, embed_dim)
    o = o @ params['o_w'].T + params['o_b']
    r = o + vision_query
    mean = r.mean(-1, keepdims=True)
    var = ((r - mean) ** 2).mean(-1, keepdims=True)
    return (r - mean) * jax.lax.rsqrt(var + eps) * params['ln_g'] + params['ln_b']


if __name__ == "__main__":
    # Small synthetic config: text hidden 48, vision hidden 32, 4 heads.
    bsz, tgt_len, src_len = 2, 8, 8
    embed_dim, text_dim, num_heads = 32, 48, 4

    key = jax.random.PRNGKey(0)
    ks = jax.random.split(key, 12)
    params = {
        'q_w': jax.random.normal(ks[0], (embed_dim, embed_dim), jnp.float32) * 0.05,
        'q_b': jax.random.normal(ks[1], (embed_dim,), jnp.float32) * 0.05,
        'k_w': jax.random.normal(ks[2], (embed_dim, text_dim), jnp.float32) * 0.05,
        'k_b': jax.random.normal(ks[3], (embed_dim,), jnp.float32) * 0.05,
        'v_w': jax.random.normal(ks[4], (embed_dim, text_dim), jnp.float32) * 0.05,
        'v_b': jax.random.normal(ks[5], (embed_dim,), jnp.float32) * 0.05,
        'o_w': jax.random.normal(ks[6], (embed_dim, embed_dim), jnp.float32) * 0.05,
        'o_b': jax.random.normal(ks[7], (embed_dim,), jnp.float32) * 0.05,
        'ln_g': jnp.ones((embed_dim,), jnp.float32),
        'ln_b': jnp.zeros((embed_dim,), jnp.float32),
    }

    vision_query = jax.random.normal(ks[8], (bsz, tgt_len, embed_dim), jnp.float32)
    text_key = jax.random.normal(ks[9], (bsz, src_len, text_dim), jnp.float32)
    text_value = jax.random.normal(ks[10], (bsz, src_len, text_dim), jnp.float32)

    # Additive mask: head-broadcast form (cheap DMA path) and its per-head expansion.
    mask_bcast = jax.random.normal(
        ks[11], (bsz, 1, tgt_len, src_len), jnp.float32) * 0.1
    mask_full = jnp.broadcast_to(
        mask_bcast, (bsz, num_heads, tgt_len, src_len))

    ref = _reference(vision_query, text_key, text_value, mask_full,
                     params, num_heads)

    out_bcast = jax.block_until_ready(
        cross_adapter_t2i(vision_query, text_key, text_value, mask_bcast,
                          params, num_heads))
    out_full = jax.block_until_ready(
        cross_adapter_t2i(vision_query, text_key, text_value, mask_full,
                          params, num_heads))

    assert out_bcast.shape == (bsz, tgt_len, embed_dim)
    assert out_full.shape == (bsz, tgt_len, embed_dim)
    assert jnp.allclose(out_bcast, ref, atol=2e-2, rtol=2e-2), \
        f"max abs err (bcast mask) {jnp.max(jnp.abs(out_bcast - ref))}"
    assert jnp.allclose(out_full, ref, atol=2e-2, rtol=2e-2), \
        f"max abs err (full mask) {jnp.max(jnp.abs(out_full - ref))}"
    print("KERNEL_OK")
</pallas_src>

<mosaic_0001>
module attributes {stable_mosaic.version = 11 : i64} {
  func.func @_cross_adapter_kernel(%arg0: i32, %arg1: i32, %arg2: memref<1x8x32xf32, #tpu.memory_space<vmem>>, %arg3: memref<1x8x32xbf16, #tpu.memory_space<vmem>>, %arg4: memref<1x8x32xbf16, #tpu.memory_space<vmem>>, %arg5: memref<1x1x8x8xbf16, #tpu.memory_space<vmem>>, %arg6: memref<32x32xbf16, #tpu.memory_space<vmem>>, %arg7: memref<1x32xf32, #tpu.memory_space<vmem>>, %arg8: memref<32x32xbf16, #tpu.memory_space<vmem>>, %arg9: memref<1x32xf32, #tpu.memory_space<vmem>>, %arg10: memref<1x32xf32, #tpu.memory_space<vmem>>, %arg11: memref<1x32xf32, #tpu.memory_space<vmem>>, %arg12: memref<1x8x32xf32, #tpu.memory_space<vmem>>) attributes {dimension_semantics = [#tpu.dimension_semantics<parallel>, #tpu.dimension_semantics<parallel>], iteration_bounds = array<i64: 2, 1>, scalar_prefetch = 0 : i64, scratch_operands = 0 : i64, tpu.core_type = #tpu.core_type<tc>, window_params = [{transform_indices = @transform_0, window_bounds = array<i64: 1, 8, 32>}, {transform_indices = @transform_1, window_bounds = array<i64: 1, 8, 32>}, {transform_indices = @transform_2, window_bounds = array<i64: 1, 8, 32>}, {transform_indices = @transform_3, window_bounds = array<i64: 1, 1, 8, 8>}, {pipeline_mode = #tpu.pipeline_mode<synchronous>, transform_indices = @transform_4, window_bounds = array<i64: 32, 32>}, {pipeline_mode = #tpu.pipeline_mode<synchronous>, transform_indices = @transform_5, window_bounds = array<i64: 1, 32>}, {pipeline_mode = #tpu.pipeline_mode<synchronous>, transform_indices = @transform_6, window_bounds = array<i64: 32, 32>}, {pipeline_mode = #tpu.pipeline_mode<synchronous>, transform_indices = @transform_7, window_bounds = array<i64: 1, 32>}, {pipeline_mode = #tpu.pipeline_mode<synchronous>, transform_indices = @transform_8, window_bounds = array<i64: 1, 32>}, {pipeline_mode = #tpu.pipeline_mode<synchronous>, transform_indices = @transform_9, window_bounds = array<i64: 1, 32>}, {transform_indices = @transform_10, window_bounds = array<i64: 1, 8, 32>}]} {
    %c0 = arith.constant 0 : index
    %c0_0 = arith.constant 0 : index
    %c0_1 = arith.constant 0 : index
    %0 = vector.load %arg2[%c0, %c0_0, %c0_1] : memref<1x8x32xf32, #tpu.memory_space<vmem>>, vector<1x8x32xf32>
    %1 = vector.shape_cast %0 : vector<1x8x32xf32> to vector<8x32xf32>
    %2 = arith.truncf %1 : vector<8x32xf32> to vector<8x32xbf16>
    %c0_2 = arith.constant 0 : index
    %c0_3 = arith.constant 0 : index
    %3 = vector.load %arg6[%c0_2, %c0_3] : memref<32x32xbf16, #tpu.memory_space<vmem>>, vector<32x32xbf16>
    %cst = arith.constant dense<0.000000e+00> : vector<8x32xf32>
    %4 = tpu.matmul %2, %3, %cst {dimension_numbers = #tpu.dot_dimension_numbers<[1], [0], [0], [1], [0, 0, 1, 1], [], []>} : vector<8x32xbf16>, vector<32x32xbf16>, vector<8x32xf32> -> vector<8x32xf32>
    %c0_4 = arith.constant 0 : index
    %c0_5 = arith.constant 0 : index
    %5 = vector.load %arg7[%c0_4, %c0_5] : memref<1x32xf32, #tpu.memory_space<vmem>>, vector<1x32xf32>
    %6 = vector.broadcast %5 : vector<1x32xf32> to vector<8x32xf32>
    %7 = arith.addf %4, %6 : vector<8x32xf32>
    %8 = arith.truncf %7 : vector<8x32xf32> to vector<8x32xbf16>
    %c0_6 = arith.constant 0 : index
    %c0_7 = arith.constant 0 : index
    %c0_8 = arith.constant 0 : index
    %9 = vector.load %arg3[%c0_6, %c0_7, %c0_8] : memref<1x8x32xbf16, #tpu.memory_space<vmem>>, vector<1x8x32xbf16>
    %10 = vector.shape_cast %9 : vector<1x8x32xbf16> to vector<8x32xbf16>
    %c0_9 = arith.constant 0 : index
    %c0_10 = arith.constant 0 : index
    %c0_11 = arith.constant 0 : index
    %11 = vector.load %arg4[%c0_9, %c0_10, %c0_11] : memref<1x8x32xbf16, #tpu.memory_space<vmem>>, vector<1x8x32xbf16>
    %12 = vector.shape_cast %11 : vector<1x8x32xbf16> to vector<8x32xbf16>
    %cst_12 = arith.constant 0.000000e+00 : f32
    %13 = vector.broadcast %cst_12 : f32 to vector<8x32xf32>
    %14 = vector.extract_strided_slice %8 {offsets = [0, 0], sizes = [8, 8], strides = [1, 1]} : vector<8x32xbf16> to vector<8x8xbf16>
    %15 = vector.extract_strided_slice %10 {offsets = [0, 0], sizes = [8, 8], strides = [1, 1]} : vector<8x32xbf16> to vector<8x8xbf16>
    %16 = vector.extract_strided_slice %12 {offsets = [0, 0], sizes = [8, 8], strides = [1, 1]} : vector<8x32xbf16> to vector<8x8xbf16>
    %cst_13 = arith.constant dense<0.000000e+00> : vector<8x8xf32>
    %17 = tpu.matmul %14, %15, %cst_13 {dimension_numbers = #tpu.dot_dimension_numbers<[1], [1], [0], [0], [0, 0, 1, 0], [], []>} : vector<8x8xbf16>, vector<8x8xbf16>, vector<8x8xf32> -> vector<8x8xf32>
    %c0_14 = arith.constant 0 : index
    %c0_15 = arith.constant 0 : index
    %c0_16 = arith.constant 0 : index
    %c0_17 = arith.constant 0 : index
    %18 = vector.load %arg5[%c0_14, %c0_15, %c0_16, %c0_17] : memref<1x1x8x8xbf16, #tpu.memory_space<vmem>>, vector<1x1x8x8xbf16>
    %19 = vector.shape_cast %18 : vector<1x1x8x8xbf16> to vector<8x8xbf16>
    %20 = arith.extf %19 : vector<8x8xbf16> to vector<8x8xf32>
    %21 = arith.addf %17, %20 : vector<8x8xf32>
    %cst_18 = arith.constant dense<0xFF800000> : vector<8xf32>
    %22 = vector.multi_reduction <maximumf>, %21, %cst_18 [1] : vector<8x8xf32> to vector<8xf32>
    %23 = vector.shape_cast %22 : vector<8xf32> to vector<8x1xf32>
    %24 = vector.broadcast %23 : vector<8x1xf32> to vector<8x8xf32>
    %25 = arith.subf %21, %24 : vector<8x8xf32>
    %26 = math.exp %25 : vector<8x8xf32>
    %cst_19 = arith.constant dense<0.000000e+00> : vector<8xf32>
    %27 = vector.multi_reduction <add>, %26, %cst_19 [1] : vector<8x8xf32> to vector<8xf32>
    %28 = vector.shape_cast %27 : vector<8xf32> to vector<8x1xf32>
    %29 = tpu.reciprocal %28 {approx = true} : vector<8x1xf32> -> vector<8x1xf32>
    %30 = vector.broadcast %29 : vector<8x1xf32> to vector<8x8xf32>
    %31 = arith.mulf %26, %30 : vector<8x8xf32>
    %32 = arith.truncf %31 : vector<8x8xf32> to vector<8x8xbf16>
    %cst_20 = arith.constant dense<0.000000e+00> : vector<8x8xf32>
    %33 = tpu.matmul %32, %16, %cst_20 {dimension_numbers = #tpu.dot_dimension_numbers<[1], [0], [0], [1], [0, 0, 1, 1], [], []>} : vector<8x8xbf16>, vector<8x8xbf16>, vector<8x8xf32> -> vector<8x8xf32>
    %34 = arith.truncf %33 : vector<8x8xf32> to vector<8x8xbf16>
    %c0_21 = arith.constant 0 : index
    %c0_22 = arith.constant 0 : index
    %35 = vector.load %arg8[%c0_21, %c0_22] : memref<32x32xbf16, #tpu.memory_space<vmem>>, vector<8x32xbf16>
    %cst_23 = arith.constant dense<0.000000e+00> : vector<8x32xf32>
    %36 = tpu.matmul %34, %35, %cst_23 {dimension_numbers = #tpu.dot_dimension_numbers<[1], [0], [0], [1], [0, 0, 1, 1], [], []>} : vector<8x8xbf16>, vector<8x32xbf16>, vector<8x32xf32> -> vector<8x32xf32>
    %37 = arith.addf %13, %36 : vector<8x32xf32>
    %38 = vector.extract_strided_slice %8 {offsets = [0, 8], sizes = [8, 8], strides = [1, 1]} : vector<8x32xbf16> to vector<8x8xbf16>
    %39 = vector.extract_strided_slice %10 {offsets = [0, 8], sizes = [8, 8], strides = [1, 1]} : vector<8x32xbf16> to vector<8x8xbf16>
    %40 = vector.extract_strided_slice %12 {offsets = [0, 8], sizes = [8, 8], strides = [1, 1]} : vector<8x32xbf16> to vector<8x8xbf16>
    %cst_24 = arith.constant dense<0.000000e+00> : vector<8x8xf32>
    %41 = tpu.matmul %38, %39, %cst_24 {dimension_numbers = #tpu.dot_dimension_numbers<[1], [1], [0], [0], [0, 0, 1, 0], [], []>} : vector<8x8xbf16>, vector<8x8xbf16>, vector<8x8xf32> -> vector<8x8xf32>
    %c0_25 = arith.constant 0 : index
    %c0_26 = arith.constant 0 : index
    %c0_27 = arith.constant 0 : index
    %c0_28 = arith.constant 0 : index
    %42 = vector.load %arg5[%c0_25, %c0_26, %c0_27, %c0_28] : memref<1x1x8x8xbf16, #tpu.memory_space<vmem>>, vector<1x1x8x8xbf16>
    %43 = vector.shape_cast %42 : vector<1x1x8x8xbf16> to vector<8x8xbf16>
    %44 = arith.extf %43 : vector<8x8xbf16> to vector<8x8xf32>
    %45 = arith.addf %41, %44 : vector<8x8xf32>
    %cst_29 = arith.constant dense<0xFF800000> : vector<8xf32>
    %46 = vector.multi_reduction <maximumf>, %45, %cst_29 [1] : vector<8x8xf32> to vector<8xf32>
    %47 = vector.shape_cast %46 : vector<8xf32> to vector<8x1xf32>
    %48 = vector.broadcast %47 : vector<8x1xf32> to vector<8x8xf32>
    %49 = arith.subf %45, %48 : vector<8x8xf32>
    %50 = math.exp %49 : vector<8x8xf32>
    %cst_30 = arith.constant dense<0.000000e+00> : vector<8xf32>
    %51 = vector.multi_reduction <add>, %50, %cst_30 [1] : vector<8x8xf32> to vector<8xf32>
    %52 = vector.shape_cast %51 : vector<8xf32> to vector<8x1xf32>
    %53 = tpu.reciprocal %52 {approx = true} : vector<8x1xf32> -> vector<8x1xf32>
    %54 = vector.broadcast %53 : vector<8x1xf32> to vector<8x8xf32>
    %55 = arith.mulf %50, %54 : vector<8x8xf32>
    %56 = arith.truncf %55 : vector<8x8xf32> to vector<8x8xbf16>
    %cst_31 = arith.constant dense<0.000000e+00> : vector<8x8xf32>
    %57 = tpu.matmul %56, %40, %cst_31 {dimension_numbers = #tpu.dot_dimension_numbers<[1], [0], [0], [1], [0, 0, 1, 1], [], []>} : vector<8x8xbf16>, vector<8x8xbf16>, vector<8x8xf32> -> vector<8x8xf32>
    %58 = arith.truncf %57 : vector<8x8xf32> to vector<8x8xbf16>
    %c8 = arith.constant 8 : index
    %c0_32 = arith.constant 0 : index
    %59 = vector.load %arg8[%c8, %c0_32] : memref<32x32xbf16, #tpu.memory_space<vmem>>, vector<8x32xbf16>
    %cst_33 = arith.constant dense<0.000000e+00> : vector<8x32xf32>
    %60 = tpu.matmul %58, %59, %cst_33 {dimension_numbers = #tpu.dot_dimension_numbers<[1], [0], [0], [1], [0, 0, 1, 1], [], []>} : vector<8x8xbf16>, vector<8x32xbf16>, vector<8x32xf32> -> vector<8x32xf32>
    %61 = arith.addf %37, %60 : vector<8x32xf32>
    %62 = vector.extract_strided_slice %8 {offsets = [0, 16], sizes = [8, 8], strides = [1, 1]} : vector<8x32xbf16> to vector<8x8xbf16>
    %63 = vector.extract_strided_slice %10 {offsets = [0, 16], sizes = [8, 8], strides = [1, 1]} : vector<8x32xbf16> to vector<8x8xbf16>
    %64 = vector.extract_strided_slice %12 {offsets = [0, 16], sizes = [8, 8], strides = [1, 1]} : vector<8x32xbf16> to vector<8x8xbf16>
    %cst_34 = arith.constant dense<0.000000e+00> : vector<8x8xf32>
    %65 = tpu.matmul %62, %63, %cst_34 {dimension_numbers = #tpu.dot_dimension_numbers<[1], [1], [0], [0], [0, 0, 1, 0], [], []>} : vector<8x8xbf16>, vector<8x8xbf16>, vector<8x8xf32> -> vector<8x8xf32>
    %c0_35 = arith.constant 0 : index
    %c0_36 = arith.constant 0 : index
    %c0_37 = arith.constant 0 : index
    %c0_38 = arith.constant 0 : index
    %66 = vector.load %arg5[%c0_35, %c0_36, %c0_37, %c0_38] : memref<1x1x8x8xbf16, #tpu.memory_space<vmem>>, vector<1x1x8x8xbf16>
    %67 = vector.shape_cast %66 : vector<1x1x8x8xbf16> to vector<8x8xbf16>
    %68 = arith.extf %67 : vector<8x8xbf16> to vector<8x8xf32>
    %69 = arith.addf %65, %68 : vector<8x8xf32>
    %cst_39 = arith.constant dense<0xFF800000> : vector<8xf32>
    %70 = vector.multi_reduction <maximumf>, %69, %cst_39 [1] : vector<8x8xf32> to vector<8xf32>
    %71 = vector.shape_cast %70 : vector<8xf32> to vector<8x1xf32>
    %72 = vector.broadcast %71 : vector<8x1xf32> to vector<8x8xf32>
    %73 = arith.subf %69, %72 : vector<8x8xf32>
    %74 = math.exp %73 : vector<8x8xf32>
    %cst_40 = arith.constant dense<0.000000e+00> : vector<8xf32>
    %75 = vector.multi_reduction <add>, %74, %cst_40 [1] : vector<8x8xf32> to vector<8xf32>
    %76 = vector.shape_cast %75 : vector<8xf32> to vector<8x1xf32>
    %77 = tpu.reciprocal %76 {approx = true} : vector<8x1xf32> -> vector<8x1xf32>
    %78 = vector.broadcast %77 : vector<8x1xf32> to vector<8x8xf32>
    %79 = arith.mulf %74, %78 : vector<8x8xf32>
    %80 = arith.truncf %79 : vector<8x8xf32> to vector<8x8xbf16>
    %cst_41 = arith.constant dense<0.000000e+00> : vector<8x8xf32>
    %81 = tpu.matmul %80, %64, %cst_41 {dimension_numbers = #tpu.dot_dimension_numbers<[1], [0], [0], [1], [0, 0, 1, 1], [], []>} : vector<8x8xbf16>, vector<8x8xbf16>, vector<8x8xf32> -> vector<8x8xf32>
    %82 = arith.truncf %81 : vector<8x8xf32> to vector<8x8xbf16>
    %c16 = arith.constant 16 : index
    %c0_42 = arith.constant 0 : index
    %83 = vector.load %arg8[%c16, %c0_42] : memref<32x32xbf16, #tpu.memory_space<vmem>>, vector<8x32xbf16>
    %cst_43 = arith.constant dense<0.000000e+00> : vector<8x32xf32>
    %84 = tpu.matmul %82, %83, %cst_43 {dimension_numbers = #tpu.dot_dimension_numbers<[1], [0], [0], [1], [0, 0, 1, 1], [], []>} : vector<8x8xbf16>, vector<8x32xbf16>, vector<8x32xf32> -> vector<8x32xf32>
    %85 = arith.addf %61, %84 : vector<8x32xf32>
    %86 = vector.extract_strided_slice %8 {offsets = [0, 24], sizes = [8, 8], strides = [1, 1]} : vector<8x32xbf16> to vector<8x8xbf16>
    %87 = vector.extract_strided_slice %10 {offsets = [0, 24], sizes = [8, 8], strides = [1, 1]} : vector<8x32xbf16> to vector<8x8xbf16>
    %88 = vector.extract_strided_slice %12 {offsets = [0, 24], sizes = [8, 8], strides = [1, 1]} : vector<8x32xbf16> to vector<8x8xbf16>
    %cst_44 = arith.constant dense<0.000000e+00> : vector<8x8xf32>
    %89 = tpu.matmul %86, %87, %cst_44 {dimension_numbers = #tpu.dot_dimension_numbers<[1], [1], [0], [0], [0, 0, 1, 0], [], []>} : vector<8x8xbf16>, vector<8x8xbf16>, vector<8x8xf32> -> vector<8x8xf32>
    %c0_45 = arith.constant 0 : index
    %c0_46 = arith.constant 0 : index
    %c0_47 = arith.constant 0 : index
    %c0_48 = arith.constant 0 : index
    %90 = vector.load %arg5[%c0_45, %c0_46, %c0_47, %c0_48] : memref<1x1x8x8xbf16, #tpu.memory_space<vmem>>, vector<1x1x8x8xbf16>
    %91 = vector.shape_cast %90 : vector<1x1x8x8xbf16> to vector<8x8xbf16>
    %92 = arith.extf %91 : vector<8x8xbf16> to vector<8x8xf32>
    %93 = arith.addf %89, %92 : vector<8x8xf32>
    %cst_49 = arith.constant dense<0xFF800000> : vector<8xf32>
    %94 = vector.multi_reduction <maximumf>, %93, %cst_49 [1] : vector<8x8xf32> to vector<8xf32>
    %95 = vector.shape_cast %94 : vector<8xf32> to vector<8x1xf32>
    %96 = vector.broadcast %95 : vector<8x1xf32> to vector<8x8xf32>
    %97 = arith.subf %93, %96 : vector<8x8xf32>
    %98 = math.exp %97 : vector<8x8xf32>
    %cst_50 = arith.constant dense<0.000000e+00> : vector<8xf32>
    %99 = vector.multi_reduction <add>, %98, %cst_50 [1] : vector<8x8xf32> to vector<8xf32>
    %100 = vector.shape_cast %99 : vector<8xf32> to vector<8x1xf32>
    %101 = tpu.reciprocal %100 {approx = true} : vector<8x1xf32> -> vector<8x1xf32>
    %102 = vector.broadcast %101 : vector<8x1xf32> to vector<8x8xf32>
    %103 = arith.mulf %98, %102 : vector<8x8xf32>
    %104 = arith.truncf %103 : vector<8x8xf32> to vector<8x8xbf16>
    %cst_51 = arith.constant dense<0.000000e+00> : vector<8x8xf32>
    %105 = tpu.matmul %104, %88, %cst_51 {dimension_numbers = #tpu.dot_dimension_numbers<[1], [0], [0], [1], [0, 0, 1, 1], [], []>} : vector<8x8xbf16>, vector<8x8xbf16>, vector<8x8xf32> -> vector<8x8xf32>
    %106 = arith.truncf %105 : vector<8x8xf32> to vector<8x8xbf16>
    %c24 = arith.constant 24 : index
    %c0_52 = arith.constant 0 : index
    %107 = vector.load %arg8[%c24, %c0_52] : memref<32x32xbf16, #tpu.memory_space<vmem>>, vector<8x32xbf16>
    %cst_53 = arith.constant dense<0.000000e+00> : vector<8x32xf32>
    %108 = tpu.matmul %106, %107, %cst_53 {dimension_numbers = #tpu.dot_dimension_numbers<[1], [0], [0], [1], [0, 0, 1, 1], [], []>} : vector<8x8xbf16>, vector<8x32xbf16>, vector<8x32xf32> -> vector<8x32xf32>
    %109 = arith.addf %85, %108 : vector<8x32xf32>
    %c0_54 = arith.constant 0 : index
    %c0_55 = arith.constant 0 : index
    %110 = vector.load %arg9[%c0_54, %c0_55] : memref<1x32xf32, #tpu.memory_space<vmem>>, vector<1x32xf32>
    %111 = vector.broadcast %110 : vector<1x32xf32> to vector<8x32xf32>
    %112 = arith.addf %109, %111 : vector<8x32xf32>
    %113 = arith.addf %112, %1 : vector<8x32xf32>
    %cst_56 = arith.constant dense<0.000000e+00> : vector<8xf32>
    %114 = vector.multi_reduction <add>, %113, %cst_56 [1] : vector<8x32xf32> to vector<8xf32>
    %115 = vector.shape_cast %114 : vector<8xf32> to vector<8x1xf32>
    %cst_57 = arith.constant 3.200000e+01 : f32
    %116 = vector.broadcast %cst_57 : f32 to vector<8x1xf32>
    %117 = arith.divf %115, %116 : vector<8x1xf32>
    %118 = vector.broadcast %117 : vector<8x1xf32> to vector<8x32xf32>
    %119 = arith.subf %113, %118 : vector<8x32xf32>
    %120 = arith.mulf %119, %119 : vector<8x32xf32>
    %cst_58 = arith.constant dense<0.000000e+00> : vector<8xf32>
    %121 = vector.multi_reduction <add>, %120, %cst_58 [1] : vector<8x32xf32> to vector<8xf32>
    %122 = vector.shape_cast %121 : vector<8xf32> to vector<8x1xf32>
    %cst_59 = arith.constant 3.200000e+01 : f32
    %123 = vector.broadcast %cst_59 : f32 to vector<8x1xf32>
    %124 = arith.divf %122, %123 : vector<8x1xf32>
    %125 = vector.broadcast %117 : vector<8x1xf32> to vector<8x32xf32>
    %126 = arith.subf %113, %125 : vector<8x32xf32>
    %cst_60 = arith.constant 9.99999974E-6 : f32
    %127 = vector.broadcast %cst_60 : f32 to vector<8x1xf32>
    %128 = arith.addf %124, %127 : vector<8x1xf32>
    %129 = math.rsqrt %128 : vector<8x1xf32>
    %130 = vector.broadcast %129 : vector<8x1xf32> to vector<8x32xf32>
    %131 = arith.mulf %126, %130 : vector<8x32xf32>
    %c0_61 = arith.constant 0 : index
    %c0_62 = arith.constant 0 : index
    %132 = vector.load %arg10[%c0_61, %c0_62] : memref<1x32xf32, #tpu.memory_space<vmem>>, vector<1x32xf32>
    %133 = vector.broadcast %132 : vector<1x32xf32> to vector<8x32xf32>
    %134 = arith.mulf %131, %133 : vector<8x32xf32>
    %c0_63 = arith.constant 0 : index
    %c0_64 = arith.constant 0 : index
    %135 = vector.load %arg11[%c0_63, %c0_64] : memref<1x32xf32, #tpu.memory_space<vmem>>, vector<1x32xf32>
    %136 = vector.broadcast %135 : vector<1x32xf32> to vector<8x32xf32>
    %137 = arith.addf %134, %136 : vector<8x32xf32>
    %c0_65 = arith.constant 0 : index
    %c0_66 = arith.constant 0 : index
    %c0_67 = arith.constant 0 : index
    %138 = vector.load %arg12[%c0_65, %c0_66, %c0_67] : memref<1x8x32xf32, #tpu.memory_space<vmem>>, vector<1x8x32xf32>
    %139 = vector.shape_cast %138 : vector<1x8x32xf32> to vector<8x32xf32>
    %140 = vector.shape_cast %137 : vector<8x32xf32> to vector<1x8x32xf32>
    tpu.vector_store %arg12[%c0_65, %c0_66, %c0_67], %140 {strides = array<i32>} : memref<1x8x32xf32, #tpu.memory_space<vmem>>, vector<1x8x32xf32>,
    return
  }
  func.func @transform_0(%arg0: i32, %arg1: i32) -> (i32, i32, i32) {
    %c0_i32 = arith.constant 0 : i32
    %c0_i32_0 = arith.constant 0 : i32
    return %arg0, %arg1, %c0_i32 : i32, i32, i32
  }
  func.func @transform_1(%arg0: i32, %arg1: i32) -> (i32, i32, i32) {
    %c0_i32 = arith.constant 0 : i32
    %c0_i32_0 = arith.constant 0 : i32
    %c0_i32_1 = arith.constant 0 : i32
    return %arg0, %c0_i32, %c0_i32_0 : i32, i32, i32
  }
  func.func @transform_2(%arg0: i32, %arg1: i32) -> (i32, i32, i32) {
    %c0_i32 = arith.constant 0 : i32
    %c0_i32_0 = arith.constant 0 : i32
    %c0_i32_1 = arith.constant 0 : i32
    return %arg0, %c0_i32, %c0_i32_0 : i32, i32, i32
  }
  func.func @transform_3(%arg0: i32, %arg1: i32) -> (i32, i32, i32, i32) {
    %c0_i32 = arith.constant 0 : i32
    %c0_i32_0 = arith.constant 0 : i32
    %c0_i32_1 = arith.constant 0 : i32
    return %arg0, %c0_i32, %arg1, %c0_i32_0 : i32, i32, i32, i32
  }
  func.func @transform_4(%arg0: i32, %arg1: i32) -> (i32, i32) {
    %c0_i32 = arith.constant 0 : i32
    %c0_i32_0 = arith.constant 0 : i32
    %c0_i32_1 = arith.constant 0 : i32
    return %c0_i32, %c0_i32_0 : i32, i32
  }
  func.func @transform_5(%arg0: i32, %arg1: i32) -> (i32, i32) {
    %c0_i32 = arith.constant 0 : i32
    %c0_i32_0 = arith.constant 0 : i32
    %c0_i32_1 = arith.constant 0 : i32
    return %c0_i32, %c0_i32_0 : i32, i32
  }
  func.func @transform_6(%arg0: i32, %arg1: i32) -> (i32, i32) {
    %c0_i32 = arith.constant 0 : i32
    %c0_i32_0 = arith.constant 0 : i32
    %c0_i32_1 = arith.constant 0 : i32
    return %c0_i32, %c0_i32_0 : i32, i32
  }
  func.func @transform_7(%arg0: i32, %arg1: i32) -> (i32, i32) {
    %c0_i32 = arith.constant 0 : i32
    %c0_i32_0 = arith.constant 0 : i32
    %c0_i32_1 = arith.constant 0 : i32
    return %c0_i32, %c0_i32_0 : i32, i32
  }
  func.func @transform_8(%arg0: i32, %arg1: i32) -> (i32, i32) {
    %c0_i32 = arith.constant 0 : i32
    %c0_i32_0 = arith.constant 0 : i32
    %c0_i32_1 = arith.constant 0 : i32
    return %c0_i32, %c0_i32_0 : i32, i32
  }
  func.func @transform_9(%arg0: i32, %arg1: i32) -> (i32, i32) {
    %c0_i32 = arith.constant 0 : i32
    %c0_i32_0 = arith.constant 0 : i32
    %c0_i32_1 = arith.constant 0 : i32
    return %c0_i32, %c0_i32_0 : i32, i32
  }
  func.func @transform_10(%arg0: i32, %arg1: i32) -> (i32, i32, i32) {
    %c0_i32 = arith.constant 0 : i32
    %c0_i32_0 = arith.constant 0 : i32
    return %arg0, %arg1, %c0_i32 : i32, i32, i32
  }
}

</mosaic_0001>

<llo_original>
// kernel: tpu_custom_call.1
$region0: #{tpu_custom_call.1}
  #allocation0 [shape = 'u32[]', space=smem, size = 0x4, offset = 0x4, fixed_abs, tag = 'smem constant byte address 0x4 - core index']
  #allocation1 [shape = 'u32[144,128]{1,0:T(1,128)}', space=vmem, size = 0x12000, scoped, tag = 'internal scratch']
  %s0 = inlined_call_operand.hbm [shape: f32[2,8,32], index: 0, kind: input, shape index: {}]
  %s1 = inlined_call_operand.hbm [shape: bf16[2,8,32], index: 1, kind: input, shape index: {}]
  %s2 = inlined_call_operand.hbm [shape: bf16[2,8,32], index: 2, kind: input, shape index: {}]
  %s3 = inlined_call_operand.hbm [shape: bf16[2,1,8,8], index: 3, kind: input, shape index: {}]
  %s4 = inlined_call_operand.hbm [shape: bf16[32,32], index: 4, kind: input, shape index: {}]
  %s5 = inlined_call_operand.vmem [shape: f32[1,32], index: 5, kind: input, shape index: {}]
  %s6 = inlined_call_operand.vmem [shape: bf16[32,32], index: 6, kind: input, shape index: {}]
  %s7 = inlined_call_operand.vmem [shape: f32[1,32], index: 7, kind: input, shape index: {}]
  %s8 = inlined_call_operand.vmem [shape: f32[1,32], index: 8, kind: input, shape index: {}]
  %s9 = inlined_call_operand.vmem [shape: f32[1,32], index: 9, kind: input, shape index: {}]
  %s10 = inlined_call_operand.hbm [shape: f32[2,8,32], index: 10, kind: output, shape index: {}]
  %s11 = sld [smem:[#allocation0]]
  $region93: #{tpu_custom_call.1} parent=0
    _
  %s13 = ssub.s32 1, %s11
  %s14 = scalar_select 0, %s13, %s11
  $region1: #{tpu_custom_call.1} parent=0
    #allocation2 [shape = 'u8[8192]{0}', space=vmem, size = 0x2000, scoped, tag = 'input window, operand 0']
    #allocation3 [shape = 's32[2]{0}', space=sflag, size = 0x8, scoped, tag = 'scoped memory for tpu_custom_call.1']
    #allocation4 [shape = 's32[2]{0}', space=sflag, size = 0x8, scoped, tag = 'scoped memory for tpu_custom_call.1']
    #allocation5 [shape = 'u8[4096]{0}', space=vmem, size = 0x1000, scoped, tag = 'input window, operand 1']
    #allocation6 [shape = 's32[2]{0}', space=sflag, size = 0x8, scoped, tag = 'scoped memory for tpu_custom_call.1']
    #allocation7 [shape = 'u8[4096]{0}', space=vmem, size = 0x1000, scoped, tag = 'input window, operand 2']
    #allocation8 [shape = 'u8[4096]{0}', space=vmem, size = 0x1000, scoped, tag = 'input window, operand 3']
    #allocation9 [shape = 's32[2]{0}', space=sflag, size = 0x8, scoped, tag = 'scoped memory for tpu_custom_call.1']
    #allocation10 [shape = 'u8[8192]{0}', space=vmem, size = 0x2000, scoped, tag = 'input window, operand 4, single buffered']
    #allocation11 [shape = 'u8[8192]{0}', space=vmem, size = 0x2000, scoped, tag = 'output window, operand 0']
    %15 = vsyncpa [#allocation3], 0
    %s16 = scalar_lea.sflag [#allocation3], 1
    %17 = vsyncpa %s16, 0
    %18 = vsyncpa [#allocation6], 0
    %s19 = scalar_lea.sflag [#allocation6], 1
    %20 = vsyncpa %s19, 0
    %21 = vsyncpa [#allocation9], 0
    %s22 = scalar_lea.sflag [#allocation9], 1
    %23 = vsyncpa %s22, 0
    %24 = vsyncpa [#allocation4], 0
    %s25 = scalar_lea.sflag [#allocation4], 1
    %26 = vsyncpa %s25, 0
    loop: start=0, step=1, limit=4
    $region2: #{tpu_custom_call.1} parent=1 // loop_pre_header
      _
    $region3: #{tpu_custom_call.1} parent=1 // loop_header
      %s28 = sphi 0, %s32
      %p29 = scmp.ge.s32.totalorder %s28, 4
      %s35 = sphi 0, %s47
      %s36 = sphi 0, %s43
      %s37 = sphi 0, %s35
      %s38 = sphi 0, %s36
      %s39 = sphi 0, %s37
      %s40 = sphi 0, %s38
      %s52 = sphi 0, %s54
      %s55 = sphi 0, %s52
      %s56 = sphi 0, %s55
      %s72 = sphi 0, %s56
      %s78 = sphi 0, %s80
      %s81 = sphi 0, %s78
      %s82 = sphi 0, %s81
      %s98 = sphi 0, %s82
      %s104 = sphi 0, %s106
      %s107 = sphi 0, %s104
      %s108 = sphi 0, %s107
      %s124 = sphi 0, %s108
      %s132 = sphi 0, %s134
      %s135 = sphi 0, %s132
      %s136 = sphi 0, %s135
      %s152 = sphi 0, %s136
      %s156 = sphi 0, %s156
      %s158 = sphi 0, %s156
      %s159 = sphi 0, %s158
      %s173 = sphi 0, %s159
      %s177 = sphi 0, %s177
      %s179 = sphi 0, %s177
      %s180 = sphi 0, %s179
      %s194 = sphi 0, %s180
      %s198 = sphi 0, %s198
      %s200 = sphi 0, %s198
      %s201 = sphi 0, %s200
      %s215 = sphi 0, %s201
      %s219 = sphi 0, %s219
      %s221 = sphi 0, %s219
      %s222 = sphi 0, %s221
      %s236 = sphi 0, %s222
      %s240 = sphi 0, %s240
      %s242 = sphi 0, %s240
      %s243 = sphi 0, %s242
      %s257 = sphi 0, %s243
      %s261 = sphi 0, %s261
      %s263 = sphi 0, %s261
      %s264 = sphi 0, %s263
      %s278 = sphi 0, %s264
      %s286 = sphi 0, %s288
      %s289 = sphi 0, %s286
      %s290 = sphi 0, %s289
      %s306 = sphi 0, %s290
    $region4: #{tpu_custom_call.1} parent=1 // loop_header_branch
      %31 = sbr.rel (%p29) target = $region8
    $region5: #{tpu_custom_call.1} parent=1 // loop_body
      %s33 = ssub.s32 %s28, 1
      %s34 = ssub.s32 %s28, 2
      %s41 = sadd.s32 1, %s36
      %p42 = scmp.ge.s32.totalorder %s41, 1
      %s43 = scalar_select %p42, 0, %s41
      %s44 = sadd.s32 1, %s35
      %s45 = scalar_select %p42, %s44, %s35
      %p46 = scmp.ge.s32.totalorder %s45, 2
      %s47 = scalar_select %p46, 0, %s45
      %s48 = ssub.s32 %s35, %s47
      %s49 = ssub.s32 %s36, %s43
      %s50 = sor.u32 %s48, %s49
      %p51 = scmp.eq.s32.totalorder %s50, 0
      %s53 = sadd.s32 %s52, 1
      %s54 = scalar_select %p51, %s52, %s53
      %p57 = pneg %p51
      %p58 = scmp.eq.s32.totalorder %s28, 1
      %p59 = por %p57, %p58
      %p60 = scmp.ne.s32.totalorder %s52, %s55
      %p61 = scmp.eq.s32.totalorder %s28, 0
      %p62 = por %p60, %p61
      %p63 = scmp.ne.s32.totalorder %s52, %s55
      %p64 = scmp.eq.s32.totalorder %s33, 1
      %p65 = por %p63, %p64
      %p66 = scmp.ne.s32.totalorder %s55, %s56
      %p67 = scmp.eq.s32.totalorder %s33, 0
      %p68 = por %p66, %p67
      %p69 = scmp.ne.s32.totalorder %s55, %s56
      %p70 = scmp.eq.s32.totalorder %s34, 1
      %p71 = por %p69, %p70
      %p73 = scmp.ne.s32.totalorder %s56, %s72
      %p74 = scmp.eq.s32.totalorder %s34, 0
      %p75 = por %p73, %p74
      %s76 = ssub.s32 %s35, %s47
      %p77 = scmp.eq.s32.totalorder %s76, 0
      %s79 = sadd.s32 %s78, 1
      %s80 = scalar_select %p77, %s78, %s79
      %p83 = pneg %p77
      %p84 = scmp.eq.s32.totalorder %s28, 1
      %p85 = por %p83, %p84
      %p86 = scmp.ne.s32.totalorder %s78, %s81
      %p87 = scmp.eq.s32.totalorder %s28, 0
      %p88 = por %p86, %p87
      %p89 = scmp.ne.s32.totalorder %s78, %s81
      %p90 = scmp.eq.s32.totalorder %s33, 1
      %p91 = por %p89, %p90
      %p92 = scmp.ne.s32.totalorder %s81, %s82
      %p93 = scmp.eq.s32.totalorder %s33, 0
      %p94 = por %p92, %p93
      %p95 = scmp.ne.s32.totalorder %s81, %s82
      %p96 = scmp.eq.s32.totalorder %s34, 1
      %p97 = por %p95, %p96
      %p99 = scmp.ne.s32.totalorder %s82, %s98
      %p100 = scmp.eq.s32.totalorder %s34, 0
      %p101 = por %p99, %p100
      %s102 = ssub.s32 %s35, %s47
      %p103 = scmp.eq.s32.totalorder %s102, 0
      %s105 = sadd.s32 %s104, 1
      %s106 = scalar_select %p103, %s104, %s105
      %p109 = pneg %p103
      %p110 = scmp.eq.s32.totalorder %s28, 1
      %p111 = por %p109, %p110
      %p112 = scmp.ne.s32.totalorder %s104, %s107
      %p113 = scmp.eq.s32.totalorder %s28, 0
      %p114 = por %p112, %p113
      %p115 = scmp.ne.s32.totalorder %s104, %s107
      %p116 = scmp.eq.s32.totalorder %s33, 1
      %p117 = por %p115, %p116
      %p118 = scmp.ne.s32.totalorder %s107, %s108
      %p119 = scmp.eq.s32.totalorder %s33, 0
      %p120 = por %p118, %p119
      %p121 = scmp.ne.s32.totalorder %s107, %s108
      %p122 = scmp.eq.s32.totalorder %s34, 1
      %p123 = por %p121, %p122
      %p125 = scmp.ne.s32.totalorder %s108, %s124
      %p126 = scmp.eq.s32.totalorder %s34, 0
      %p127 = por %p125, %p126
      %s128 = ssub.s32 %s35, %s47
      %s129 = ssub.s32 %s36, %s43
      %s130 = sor.u32 %s128, %s129
      %p131 = scmp.eq.s32.totalorder %s130, 0
      %s133 = sadd.s32 %s132, 1
      %s134 = scalar_select %p131, %s132, %s133
      %p137 = pneg %p131
      %p138 = scmp.eq.s32.totalorder %s28, 1
      %p139 = por %p137, %p138
      %p140 = scmp.ne.s32.totalorder %s132, %s135
      %p141 = scmp.eq.s32.totalorder %s28, 0
      %p142 = por %p140, %p141
      %p143 = scmp.ne.s32.totalorder %s132, %s135
      %p144 = scmp.eq.s32.totalorder %s33, 1
      %p145 = por %p143, %p144
      %p146 = scmp.ne.s32.totalorder %s135, %s136
      %p147 = scmp.eq.s32.totalorder %s33, 0
      %p148 = por %p146, %p147
      %p149 = scmp.ne.s32.totalorder %s135, %s136
      %p150 = scmp.eq.s32.totalorder %s34, 1
      %p151 = por %p149, %p150
      %p153 = scmp.ne.s32.totalorder %s136, %s152
      %p154 = scmp.eq.s32.totalorder %s34, 0
      %p155 = por %p153, %p154
      %s157 = sadd.s32 %s156, 1
      %p160 = scmp.eq.s32.totalorder %s28, 1
      %p161 = scmp.ne.s32.totalorder %s156, %s158
      %p162 = scmp.eq.s32.totalorder %s28, 0
      %p163 = por %p161, %p162
      %p164 = scmp.ne.s32.totalorder %s156, %s158
      %p165 = scmp.eq.s32.totalorder %s33, 1
      %p166 = por %p164, %p165
      %p167 = scmp.ne.s32.totalorder %s158, %s159
      %p168 = scmp.eq.s32.totalorder %s33, 0
      %p169 = por %p167, %p168
      %p170 = scmp.ne.s32.totalorder %s158, %s159
      %p171 = scmp.eq.s32.totalorder %s34, 1
      %p172 = por %p170, %p171
      %p174 = scmp.ne.s32.totalorder %s159, %s173
      %p175 = scmp.eq.s32.totalorder %s34, 0
      %p176 = por %p174, %p175
      %s178 = sadd.s32 %s177, 1
      %p181 = scmp.eq.s32.totalorder %s28, 1
      %p182 = scmp.ne.s32.totalorder %s177, %s179
      %p183 = scmp.eq.s32.totalorder %s28, 0
      %p184 = por %p182, %p183
      %p185 = scmp.ne.s32.totalorder %s177, %s179
      %p186 = scmp.eq.s32.totalorder %s33, 1
      %p187 = por %p185, %p186
      %p188 = scmp.ne.s32.totalorder %s179, %s180
      %p189 = scmp.eq.s32.totalorder %s33, 0
      %p190 = por %p188, %p189
      %p191 = scmp.ne.s32.totalorder %s179, %s180
      %p192 = scmp.eq.s32.totalorder %s34, 1
      %p193 = por %p191, %p192
      %p195 = scmp.ne.s32.totalorder %s180, %s194
      %p196 = scmp.eq.s32.totalorder %s34, 0
      %p197 = por %p195, %p196
      %s199 = sadd.s32 %s198, 1
      %p202 = scmp.eq.s32.totalorder %s28, 1
      %p203 = scmp.ne.s32.totalorder %s198, %s200
      %p204 = scmp.eq.s32.totalorder %s28, 0
      %p205 = por %p203, %p204
      %p206 = scmp.ne.s32.totalorder %s198, %s200
      %p207 = scmp.eq.s32.totalorder %s33, 1
      %p208 = por %p206, %p207
      %p209 = scmp.ne.s32.totalorder %s200, %s201
      %p210 = scmp.eq.s32.totalorder %s33, 0
      %p211 = por %p209, %p210
      %p212 = scmp.ne.s32.totalorder %s200, %s201
      %p213 = scmp.eq.s32.totalorder %s34, 1
      %p214 = por %p212, %p213
      %p216 = scmp.ne.s32.totalorder %s201, %s215
      %p217 = scmp.eq.s32.totalorder %s34, 0
      %p218 = por %p216, %p217
      %s220 = sadd.s32 %s219, 1
      %p223 = scmp.eq.s32.totalorder %s28, 1
      %p224 = scmp.ne.s32.totalorder %s219, %s221
      %p225 = scmp.eq.s32.totalorder %s28, 0
      %p226 = por %p224, %p225
      %p227 = scmp.ne.s32.totalorder %s219, %s221
      %p228 = scmp.eq.s32.totalorder %s33, 1
      %p229 = por %p227, %p228
      %p230 = scmp.ne.s32.totalorder %s221, %s222
      %p231 = scmp.eq.s32.totalorder %s33, 0
      %p232 = por %p230, %p231
      %p233 = scmp.ne.s32.totalorder %s221, %s222
      %p234 = scmp.eq.s32.totalorder %s34, 1
      %p235 = por %p233, %p234
      %p237 = scmp.ne.s32.totalorder %s222, %s236
      %p238 = scmp.eq.s32.totalorder %s34, 0
      %p239 = por %p237, %p238
      %s241 = sadd.s32 %s240, 1
      %p244 = scmp.eq.s32.totalorder %s28, 1
      %p245 = scmp.ne.s32.totalorder %s240, %s242
      %p246 = scmp.eq.s32.totalorder %s28, 0
      %p247 = por %p245, %p246
      %p248 = scmp.ne.s32.totalorder %s240, %s242
      %p249 = scmp.eq.s32.totalorder %s33, 1
      %p250 = por %p248, %p249
      %p251 = scmp.ne.s32.totalorder %s242, %s243
      %p252 = scmp.eq.s32.totalorder %s33, 0
      %p253 = por %p251, %p252
      %p254 = scmp.ne.s32.totalorder %s242, %s243
      %p255 = scmp.eq.s32.totalorder %s34, 1
      %p256 = por %p254, %p255
      %p258 = scmp.ne.s32.totalorder %s243, %s257
      %p259 = scmp.eq.s32.totalorder %s34, 0
      %p260 = por %p258, %p259
      %s262 = sadd.s32 %s261, 1
      %p265 = scmp.eq.s32.totalorder %s28, 1
      %p266 = scmp.ne.s32.totalorder %s261, %s263
      %p267 = scmp.eq.s32.totalorder %s28, 0
      %p268 = por %p266, %p267
      %p269 = scmp.ne.s32.totalorder %s261, %s263
      %p270 = scmp.eq.s32.totalorder %s33, 1
      %p271 = por %p269, %p270
      %p272 = scmp.ne.s32.totalorder %s263, %s264
      %p273 = scmp.eq.s32.totalorder %s33, 0
      %p274 = por %p272, %p273
      %p275 = scmp.ne.s32.totalorder %s263, %s264
      %p276 = scmp.eq.s32.totalorder %s34, 1
      %p277 = por %p275, %p276
      %p279 = scmp.ne.s32.totalorder %s264, %s278
      %p280 = scmp.eq.s32.totalorder %s34, 0
      %p281 = por %p279, %p280
      %s282 = ssub.s32 %s35, %s47
      %s283 = ssub.s32 %s36, %s43
      %s284 = sor.u32 %s282, %s283
      %p285 = scmp.eq.s32.totalorder %s284, 0
      %s287 = sadd.s32 %s286, 1
      %s288 = scalar_select %p285, %s286, %s287
      %p291 = pneg %p285
      %p292 = scmp.eq.s32.totalorder %s28, 1
      %p293 = por %p291, %p292
      %p294 = scmp.ne.s32.totalorder %s286, %s289
      %p295 = scmp.eq.s32.totalorder %s28, 0
      %p296 = por %p294, %p295
      %p297 = scmp.ne.s32.totalorder %s286, %s289
      %p298 = scmp.eq.s32.totalorder %s33, 1
      %p299 = por %p297, %p298
      %p300 = scmp.ne.s32.totalorder %s289, %s290
      %p301 = scmp.eq.s32.totalorder %s33, 0
      %p302 = por %p300, %p301
      %p303 = scmp.ne.s32.totalorder %s289, %s290
      %p304 = scmp.eq.s32.totalorder %s34, 1
      %p305 = por %p303, %p304
      %p307 = scmp.ne.s32.totalorder %s290, %s306
      %p308 = scmp.eq.s32.totalorder %s34, 0
      %p309 = por %p307, %p308
      %p310 = scmp.le.s32.totalorder 1, %s28
      %p311 = scmp.lt.s32.totalorder %s28, 3
      %p312 = pnand %p310, %p311
      %p313 = pneg %p312
      // Predicated region
      $region9: #{tpu_custom_call.1} parent=5 // pred_check
        _
      $region10: #{tpu_custom_call.1} parent=5 // pred_check_branch
        %315 = sbr.rel (%p312) target = $region12
      $region11: #{tpu_custom_call.1} parent=5 // pred_region
        %s316 = ssub.s32 %s28, 1
        // Predicated region
        $region13: #{tpu_custom_call.1} parent=11 // pred_check
          %p317 = pneg %p169
        $region14: #{tpu_custom_call.1} parent=11 // pred_check_branch
          %319 = sbr.rel (%p317) target = $region16
        $region15: #{tpu_custom_call.1} parent=11 // pred_region
          %s321 = ssub.s32 256, 256
          %322 = vsyncadd [#allocation9], %s321
          %s323 = sshll.u32 [#allocation10], 4
          %s324 = int_to_ptr.vmem [resolvable:$true] %s323
          %329 = dma.hbm_to_vmem [thread:$0]  %s4, 256, %s324, [#allocation9], 64, 64, 4
        $region16: #{tpu_custom_call.1} parent=11 // pred_fallthru
          _
        // Predicated region
        $region17: #{tpu_custom_call.1} parent=11 // pred_check
          %p330 = pneg %p190
        $region18: #{tpu_custom_call.1} parent=11 // pred_check_branch
          %332 = sbr.rel (%p330) target = $region20
        $region19: #{tpu_custom_call.1} parent=11 // pred_region
          _
        $region20: #{tpu_custom_call.1} parent=11 // pred_fallthru
          _
        // Predicated region
        $region21: #{tpu_custom_call.1} parent=11 // pred_check
          %p333 = pneg %p211
        $region22: #{tpu_custom_call.1} parent=11 // pred_check_branch
          %335 = sbr.rel (%p333) target = $region24
        $region23: #{tpu_custom_call.1} parent=11 // pred_region
          _
        $region24: #{tpu_custom_call.1} parent=11 // pred_fallthru
          _
        // Predicated region
        $region25: #{tpu_custom_call.1} parent=11 // pred_check
          %p336 = pneg %p232
        $region26: #{tpu_custom_call.1} parent=11 // pred_check_branch
          %338 = sbr.rel (%p336) target = $region28
        $region27: #{tpu_custom_call.1} parent=11 // pred_region
          _
        $region28: #{tpu_custom_call.1} parent=11 // pred_fallthru
          _
        // Predicated region
        $region29: #{tpu_custom_call.1} parent=11 // pred_check
          %p339 = pneg %p253
        $region30: #{tpu_custom_call.1} parent=11 // pred_check_branch
          %341 = sbr.rel (%p339) target = $region32
        $region31: #{tpu_custom_call.1} parent=11 // pred_region
          _
        $region32: #{tpu_custom_call.1} parent=11 // pred_fallthru
          _
        // Predicated region
        $region33: #{tpu_custom_call.1} parent=11 // pred_check
          %p342 = pneg %p274
        $region34: #{tpu_custom_call.1} parent=11 // pred_check_branch
          %344 = sbr.rel (%p342) target = $region36
        $region35: #{tpu_custom_call.1} parent=11 // pred_region
          _
        $region36: #{tpu_custom_call.1} parent=11 // pred_fallthru
          _
      $region12: #{tpu_custom_call.1} parent=5 // pred_fallthru
        _
      %p345 = scmp.lt.s32.totalorder %s28, 2
      // Predicated region
      $region37: #{tpu_custom_call.1} parent=5 // pred_check
        %p346 = pneg %p345
      $region38: #{tpu_custom_call.1} parent=5 // pred_check_branch
        %348 = sbr.rel (%p346) target = $region40
      $region39: #{tpu_custom_call.1} parent=5 // pred_region
        // Predicated region
        $region41: #{tpu_custom_call.1} parent=39 // pred_check
          %p349 = pneg %p62
        $region42: #{tpu_custom_call.1} parent=39 // pred_check_branch
          %351 = sbr.rel (%p349) target = $region44
        $region43: #{tpu_custom_call.1} parent=39 // pred_region
          %s352 = sand.u32 %s52, 1
          %s353 = scalar_lea.sflag [#allocation3], %s352
          %s354 = sand.u32 %s52, 1
          %s355 = smul.addr %s354, 8
          %s356 = scalar_lea.vmem [#allocation2], %s355
          %s358 = ssub.s32 128, 128
          %359 = vsyncadd %s353, %s358
          %s360 = sadd.s32 %s36, %s35
          %s361 = smul.addr %s360, 128
          %s362 = scalar_lea.hbm %s0, %s361
          %s364 = sshll.u32 %s356, 4
          %s365 = int_to_ptr.vmem [resolvable:$true] %s364
          %367 = dma.hbm_to_vmem [thread:$0]  %s362, 128, %s365, %s353
        $region44: #{tpu_custom_call.1} parent=39 // pred_fallthru
          _
        // Predicated region
        $region45: #{tpu_custom_call.1} parent=39 // pred_check
          %p368 = pneg %p88
        $region46: #{tpu_custom_call.1} parent=39 // pred_check_branch
          %370 = sbr.rel (%p368) target = $region48
        $region47: #{tpu_custom_call.1} parent=39 // pred_region
          %s371 = sand.u32 %s28, 1
          %s372 = scalar_lea.sflag [#allocation6], %s371
          %s373 = sand.u32 %s78, 1
          %s374 = smul.addr %s373, 4
          %s375 = scalar_lea.vmem [#allocation5], %s374
          %s377 = ssub.s32 64, 64
          %378 = vsyncadd %s372, %s377
          %s379 = smul.addr %s35, 64
          %s380 = scalar_lea.hbm %s1, %s379
          %s382 = sshll.u32 %s375, 4
          %s383 = int_to_ptr.vmem [resolvable:$true] %s382
          %385 = dma.hbm_to_vmem [thread:$0]  %s380, 64, %s383, %s372
        $region48: #{tpu_custom_call.1} parent=39 // pred_fallthru
          _
        // Predicated region
        $region49: #{tpu_custom_call.1} parent=39 // pred_check
          %p386 = pneg %p114
        $region50: #{tpu_custom_call.1} parent=39 // pred_check_branch
          %388 = sbr.rel (%p386) target = $region52
        $region51: #{tpu_custom_call.1} parent=39 // pred_region
          %s389 = sand.u32 %s28, 1
          %s390 = scalar_lea.sflag [#allocation6], %s389
          %s391 = sand.u32 %s104, 1
          %s392 = smul.addr %s391, 4
          %s393 = scalar_lea.vmem [#allocation7], %s392
          %s395 = ssub.s32 64, 64
          %396 = vsyncadd %s390, %s395
          %s397 = smul.addr %s35, 64
          %s398 = scalar_lea.hbm %s2, %s397
          %s400 = sshll.u32 %s393, 4
          %s401 = int_to_ptr.vmem [resolvable:$true] %s400
          %403 = dma.hbm_to_vmem [thread:$0]  %s398, 64, %s401, %s390
        $region52: #{tpu_custom_call.1} parent=39 // pred_fallthru
          _
        // Predicated region
        $region53: #{tpu_custom_call.1} parent=39 // pred_check
          %p404 = pneg %p142
        $region54: #{tpu_custom_call.1} parent=39 // pred_check_branch
          %406 = sbr.rel (%p404) target = $region56
        $region55: #{tpu_custom_call.1} parent=39 // pred_region
          %s407 = sand.u32 %s28, 1
          %s408 = scalar_lea.sflag [#allocation9], %s407
          %s409 = sand.u32 %s132, 1
          %s410 = smul.addr %s409, 4
          %s411 = scalar_lea.vmem [#allocation8], %s410
          %s413 = ssub.s32 64, 64
          %414 = vsyncadd %s408, %s413
          %s415 = sadd.s32 %s36, %s35
          %s416 = smul.addr %s415, 64
          %s417 = scalar_lea.hbm %s3, %s416
          %s419 = sshll.u32 %s411, 4
          %s420 = int_to_ptr.vmem [resolvable:$true] %s419
          %422 = dma.hbm_to_vmem [thread:$0]  %s417, 64, %s420, %s408
        $region56: #{tpu_custom_call.1} parent=39 // pred_fallthru
          _
      $region40: #{tpu_custom_call.1} parent=5 // pred_fallthru
        _
      %p423 = scmp.le.s32.totalorder 1, %s28
      %p424 = scmp.lt.s32.totalorder %s28, 3
      %p425 = pnand %p423, %p424
      %p426 = pneg %p425
      // Predicated region
      $region57: #{tpu_custom_call.1} parent=5 // pred_check
        _
      $region58: #{tpu_custom_call.1} parent=5 // pred_check_branch
        %428 = sbr.rel (%p425) target = $region60
      $region59: #{tpu_custom_call.1} parent=5 // pred_region
        %s429 = ssub.s32 %s28, 1
        %s430 = sand.u32 %s55, 1
        %s431 = scalar_lea.sflag [#allocation3], %s430
        %s432 = sand.u32 %s55, 1
        %s433 = smul.addr %s432, 8
        %s434 = scalar_lea.vmem [#allocation2], %s433
        // Predicated region
        $region61: #{tpu_custom_call.1} parent=59 // pred_check
          %p435 = pneg %p68
        $region62: #{tpu_custom_call.1} parent=59 // pred_check_branch
          %437 = sbr.rel (%p435) target = $region64
        $region63: #{tpu_custom_call.1} parent=59 // pred_region
          %438 = dma.done %s431, 128
        $region64: #{tpu_custom_call.1} parent=59 // pred_fallthru
          _
        %s439 = sand.u32 %s33, 1
        %s440 = scalar_lea.sflag [#allocation6], %s439
        %s441 = sand.u32 %s81, 1
        %s442 = smul.addr %s441, 4
        %s443 = scalar_lea.vmem [#allocation5], %s442
        // Predicated region
        $region65: #{tpu_custom_call.1} parent=59 // pred_check
          %p444 = pneg %p94
        $region66: #{tpu_custom_call.1} parent=59 // pred_check_branch
          %446 = sbr.rel (%p444) target = $region68
        $region67: #{tpu_custom_call.1} parent=59 // pred_region
          %447 = dma.done %s440, 64
        $region68: #{tpu_custom_call.1} parent=59 // pred_fallthru
          _
        %s448 = sand.u32 %s33, 1
        %s449 = scalar_lea.sflag [#allocation6], %s448
        %s450 = sand.u32 %s107, 1
        %s451 = smul.addr %s450, 4
        %s452 = scalar_lea.vmem [#allocation7], %s451
        // Predicated region
        $region69: #{tpu_custom_call.1} parent=59 // pred_check
          %p453 = pneg %p120
        $region70: #{tpu_custom_call.1} parent=59 // pred_check_branch
          %455 = sbr.rel (%p453) target = $region72
        $region71: #{tpu_custom_call.1} parent=59 // pred_region
          %456 = dma.done %s449, 64
        $region72: #{tpu_custom_call.1} parent=59 // pred_fallthru
          _
        %s457 = sand.u32 %s33, 1
        %s458 = scalar_lea.sflag [#allocation9], %s457
        %s459 = sand.u32 %s135, 1
        %s460 = smul.addr %s459, 4
        %s461 = scalar_lea.vmem [#allocation8], %s460
        // Predicated region
        $region73: #{tpu_custom_call.1} parent=59 // pred_check
          %p462 = pneg %p148
        $region74: #{tpu_custom_call.1} parent=59 // pred_check_branch
          %464 = sbr.rel (%p462) target = $region76
        $region75: #{tpu_custom_call.1} parent=59 // pred_region
          %465 = dma.done %s458, 64
        $region76: #{tpu_custom_call.1} parent=59 // pred_fallthru
          _
        // Predicated region
        $region77: #{tpu_custom_call.1} parent=59 // pred_check
          %p466 = pneg %p169
        $region78: #{tpu_custom_call.1} parent=59 // pred_check_branch
          %468 = sbr.rel (%p466) target = $region80
        $region79: #{tpu_custom_call.1} parent=59 // pred_region
          %469 = dma.done [#allocation9], 256
        $region80: #{tpu_custom_call.1} parent=59 // pred_fallthru
          _
        %s470 = sand.u32 %s55, 1
        %s471 = scalar_lea.sflag [#allocation3], %s470
        %s472 = sand.u32 %s55, 1
        %s473 = smul.addr %s472, 8
        %s474 = scalar_lea.vmem [#allocation2], %s473
        %p475 = pneg %p68
        %p476 = pneg %p65
        %s477 = sand.u32 %s33, 1
        %s478 = scalar_lea.sflag [#allocation6], %s477
        %s479 = sand.u32 %s81, 1
        %s480 = smul.addr %s479, 4
        %s481 = scalar_lea.vmem [#allocation5], %s480
        %p482 = pneg %p94
        %p483 = pneg %p91
        %s484 = sand.u32 %s33, 1
        %s485 = scalar_lea.sflag [#allocation6], %s484
        %s486 = sand.u32 %s107, 1
        %s487 = smul.addr %s486, 4
        %s488 = scalar_lea.vmem [#allocation7], %s487
        %p489 = pneg %p120
        %p490 = pneg %p117
        %s491 = sand.u32 %s33, 1
        %s492 = scalar_lea.sflag [#allocation9], %s491
        %s493 = sand.u32 %s135, 1
        %s494 = smul.addr %s493, 4
        %s495 = scalar_lea.vmem [#allocation8], %s494
        %p496 = pneg %p148
        %p497 = pneg %p145
        %p498 = pneg %p169
        %p499 = pneg %p166
        %p500 = pneg %p190
        %p501 = pneg %p187
        %p502 = pneg %p211
        %p503 = pneg %p208
        %p504 = pneg %p232
        %p505 = pneg %p229
        %p506 = pneg %p253
        %p507 = pneg %p250
        %p508 = pneg %p274
        %p509 = pneg %p271
        %p510 = pneg %p302
        %p511 = pneg %p299
        %s512 = sand.u32 %s289, 1
        %s513 = scalar_lea.sflag [#allocation4], %s512
        %s514 = sand.u32 %s289, 1
        %s515 = smul.addr %s514, 8
        %s516 = scalar_lea.vmem [#allocation11], %s515
        %v518 = vld [vmem:[%s434] sm:$0xff]
        %v519 = vpack.c.bf16 %v518, %v518
        %v520 = vld [vmem:[#allocation10] sm:$0xf]
        %v521 = vld [vmem:[#allocation10 + $0x4] sm:$0xf]
        %v522 = vld [vmem:[#allocation10 + $0x8] sm:$0xf]
        %v523 = vld [vmem:[#allocation10 + $0xc] sm:$0xf]
        %v524 = vld [vmem:[%s5] sm:$0x1]
        %v526 = vlaneseq
        %v527 = vshrl.u32 %v526, 7
        %v528 = vsub.s32 0, %v527
        %v529 = vrot.slane %v524, %v528
        %v535 = vunpack.c.l.b16 %v520
        %v536 = vunpack.c.l.b16 %v521
        %v537 = vunpack.c.l.b16 %v522
        %v538 = vunpack.c.l.b16 %v523
        %v539 = vpack.c.b16 %v536, %v535
        %v540 = vpack.c.b16 %v538, %v537
        %vm543 = vcmask 261120
        %v545 = vsel %vm543, %v519, 0
        %547 = vmatprep.subr.bf16.mxu0 0
        %548 = vmatpush1.bf16.msra.mxu0 %v539
        %549 = vmatprep.subr.bf16.mxu0 0
        %550 = vmatpush1.bf16.msra.mxu0 %v540
        %551 = vmatprep.subr.bf16.mxu0 0
        %552 = vmatpush1.bf16.msra.mxu0 0
        %553 = vmatprep.subr.bf16.mxu0 0
        %554 = vmatpush1.bf16.msra.mxu0 0
        %555 = vmatprep.subr.bf16.mxu0 0
        %556 = vmatpush1.bf16.msra.mxu0 0
        %557 = vmatprep.subr.bf16.mxu0 0
        %558 = vmatpush1.bf16.msra.mxu0 0
        %559 = vmatprep.subr.bf16.mxu0 0
        %560 = vmatpush1.bf16.msra.mxu0 0
        %561 = vmatprep.subr.bf16.mxu0 0
        %562 = vmatpush1.bf16.msra.mxu0 0
        %563 = vmatprep.subr.bf16.mxu0 0
        %564 = vmatpush1.bf16.msra.mxu0 0
        %565 = vmatprep.subr.bf16.mxu0 0
        %566 = vmatpush1.bf16.msra.mxu0 0
        %567 = vmatprep.subr.bf16.mxu0 0
        %568 = vmatpush1.bf16.msra.mxu0 0
        %569 = vmatprep.subr.bf16.mxu0 0
        %570 = vmatpush1.bf16.msra.mxu0 0
        %571 = vmatprep.subr.bf16.mxu0 0
        %572 = vmatpush1.bf16.msra.mxu0 0
        %573 = vmatprep.subr.bf16.mxu0 0
        %574 = vmatpush1.bf16.msra.mxu0 0
        %575 = vmatprep.subr.bf16.mxu0 0
        %576 = vmatpush1.bf16.msra.mxu0 0
        %577 = vmatprep.subr.bf16.mxu0 0
        %578 = vmatpush1.bf16.msra.mxu0 0
        %579 = vmatprep.mubr.bf16.mxu0 0
        %580 = vmatmul.mubr.bf16.gmra.mrb[0].mxu0 %v545
        %v581 = vpop.f32.mrb[0].mxu0
        %v582 = vadd.f32 %v529, %v581
        %v583 = vpop.f32.mrb[0].mxu0
        %v584 = vpop.f32.mrb[0].mxu0
        %v585 = vpop.f32.mrb[0].mxu0
        %586 = vdwg.mxu0
        %v587 = vpack.c.bf16 %v582, %v582
        %v588 = vld [vmem:[%s443] sm:$0xf]
        %v589 = vld [vmem:[%s452] sm:$0xf]
        %v590 = vld [vmem:[%s461] sm:$0xf]
        %v591 = vunpack.c.l.bf16 %v590
        %vm592 = vcmask 64512
        %v594 = vsel %vm592, %v587, 0
        %v597 = vsel %vm592, %v588, 0
        %599 = vmatprep.subr.bf16.mxu0 0
        %600 = vmatpush1.bf16.xpose.msra.mxu0 %v597
        %601 = vmatprep.subr.bf16.mxu0 0
        %602 = vmatpush1.bf16.xpose.msra.mxu0 0
        %603 = vmatprep.subr.bf16.mxu0 0
        %604 = vmatpush1.bf16.xpose.msra.mxu0 0
        %605 = vmatprep.subr.bf16.mxu0 0
        %606 = vmatpush1.bf16.xpose.msra.mxu0 0
        %607 = vmatprep.subr.bf16.mxu0 0
        %608 = vmatpush1.bf16.xpose.msra.mxu0 0
        %609 = vmatprep.subr.bf16.mxu0 0
        %610 = vmatpush1.bf16.xpose.msra.mxu0 0
        %611 = vmatprep.subr.bf16.mxu0 0
        %612 = vmatpush1.bf16.xpose.msra.mxu0 0
        %613 = vmatprep.subr.bf16.mxu0 0
        %614 = vmatpush1.bf16.xpose.msra.mxu0 0
        %615 = vmatprep.subr.bf16.mxu0 0
        %616 = vmatpush1.bf16.xpose.msra.mxu0 0
        %617 = vmatprep.subr.bf16.mxu0 0
        %618 = vmatpush1.bf16.xpose.msra.mxu0 0
        %619 = vmatprep.subr.bf16.mxu0 0
        %620 = vmatpush1.bf16.xpose.msra.mxu0 0
        %621 = vmatprep.subr.bf16.mxu0 0
        %622 = vmatpush1.bf16.xpose.msra.mxu0 0
        %623 = vmatprep.subr.bf16.mxu0 0
        %624 = vmatpush1.bf16.xpose.msra.mxu0 0
        %625 = vmatprep.subr.bf16.mxu0 0
        %626 = vmatpush1.bf16.xpose.msra.mxu0 0
        %627 = vmatprep.subr.bf16.mxu0 0
        %628 = vmatpush1.bf16.xpose.msra.mxu0 0
        %629 = vmatprep.subr.bf16.mxu0 0
        %630 = vmatpush1.bf16.xpose.msra.mxu0 0
        %631 = vmatprep.mubr.bf16.mxu0 0
        %632 = vmatmul.mubr.bf16.gmra.mrb[0].mxu0 %v594
        %v633 = vpop.f32.mrb[0].mxu0
        %v634 = vadd.f32 %v591, %v633
        %v635 = vpop.f32.mrb[0].mxu0
        %v636 = vpop.f32.mrb[0].mxu0
        %v637 = vpop.f32.mrb[0].mxu0
        %638 = vdwg.mxu0
        %v639 = vsel %vm592, %v634, -inf
        %640 = vmax.xlane.f32.xlu0 %v639
        %v641 = vpop.xlane.xlu0 %640
        %v642 = vsub.f32 %v634, %v641
        %v643 = vmul.f32 %v642, 1.442695
        %v644 = vpow.pop %v643
        %v645 = vsel %vm592, %v644, 0.0
        %646 = vadd.xlane.f32.xlu0 %v645
        %v647 = vpop.xlane.xlu0 %646
        %v648 = vrcp.pop %v647
        %v649 = vmul.f32 %v644, %v648
        %v650 = vpack.c.bf16 %v649, %v649
        %v652 = vsel %vm592, %v650, 0
        %vm654 = vcmask 1043456
        %v656 = vsel %vm654, %v589, 0
        %658 = vmatprep.subr.bf16.mxu0 0
        %659 = vmatpush1.bf16.msra.mxu0 %v656
        %660 = vmatprep.subr.bf16.mxu0 0
        %661 = vmatpush1.bf16.msra.mxu0 0
        %662 = vmatprep.subr.bf16.mxu0 0
        %663 = vmatpush1.bf16.msra.mxu0 0
        %664 = vmatprep.subr.bf16.mxu0 0
        %665 = vmatpush1.bf16.msra.mxu0 0
        %666 = vmatprep.subr.bf16.mxu0 0
        %667 = vmatpush1.bf16.msra.mxu0 0
        %668 = vmatprep.subr.bf16.mxu0 0
        %669 = vmatpush1.bf16.msra.mxu0 0
        %670 = vmatprep.subr.bf16.mxu0 0
        %671 = vmatpush1.bf16.msra.mxu0 0
        %672 = vmatprep.subr.bf16.mxu0 0
        %673 = vmatpush1.bf16.msra.mxu0 0
        %674 = vmatprep.subr.bf16.mxu0 0
        %675 = vmatpush1.bf16.msra.mxu0 0
        %676 = vmatprep.subr.bf16.mxu0 0
        %677 = vmatpush1.bf16.msra.mxu0 0
        %678 = vmatprep.subr.bf16.mxu0 0
        %679 = vmatpush1.bf16.msra.mxu0 0
        %680 = vmatprep.subr.bf16.mxu0 0
        %681 = vmatpush1.bf16.msra.mxu0 0
        %682 = vmatprep.subr.bf16.mxu0 0
        %683 = vmatpush1.bf16.msra.mxu0 0
        %684 = vmatprep.subr.bf16.mxu0 0
        %685 = vmatpush1.bf16.msra.mxu0 0
        %686 = vmatprep.subr.bf16.mxu0 0
        %687 = vmatpush1.bf16.msra.mxu0 0
        %688 = vmatprep.subr.bf16.mxu0 0
        %689 = vmatpush1.bf16.msra.mxu0 0
        %690 = vmatprep.mubr.bf16.mxu0 0
        %691 = vmatmul.mubr.bf16.gmra.mrb[0].mxu0 %v652
        %v692 = vpop.f32.mrb[0].mxu0
        %v693 = vadd.f32 0.0, %v692
        %v694 = vpop.f32.mrb[0].mxu0
        %v695 = vpop.f32.mrb[0].mxu0
        %v696 = vpop.f32.mrb[0].mxu0
        %697 = vdwg.mxu0
        %v698 = vpack.c.bf16 %v693, %v693
        %v699 = vld [vmem:[%s6] sm:$0xf]
        %701 = vrot.lane.b32.xlu0 %v587, 120
        %v702 = vpop.permute.xlu0 %701
        %v704 = vunpack.c.l.b16 %v588
        %v705 = vpack.c.b16 %v704, %v704
        %706 = vrot.lane.b32.xlu0 %v705, 120
        %v707 = vpop.permute.xlu0 %706
        %v709 = vsel %vm592, %v702, 0
        %v712 = vsel %vm592, %v707, 0
        %714 = vmatprep.subr.bf16.mxu0 0
        %715 = vmatpush1.bf16.xpose.msra.mxu0 %v712
        %716 = vmatprep.subr.bf16.mxu0 0
        %717 = vmatpush1.bf16.xpose.msra.mxu0 0
        %718 = vmatprep.subr.bf16.mxu0 0
        %719 = vmatpush1.bf16.xpose.msra.mxu0 0
        %720 = vmatprep.subr.bf16.mxu0 0
        %721 = vmatpush1.bf16.xpose.msra.mxu0 0
        %722 = vmatprep.subr.bf16.mxu0 0
        %723 = vmatpush1.bf16.xpose.msra.mxu0 0
        %724 = vmatprep.subr.bf16.mxu0 0
        %725 = vmatpush1.bf16.xpose.msra.mxu0 0
        %726 = vmatprep.subr.bf16.mxu0 0
        %727 = vmatpush1.bf16.xpose.msra.mxu0 0
        %728 = vmatprep.subr.bf16.mxu0 0
        %729 = vmatpush1.bf16.xpose.msra.mxu0 0
        %730 = vmatprep.subr.bf16.mxu0 0
        %731 = vmatpush1.bf16.xpose.msra.mxu0 0
        %732 = vmatprep.subr.bf16.mxu0 0
        %733 = vmatpush1.bf16.xpose.msra.mxu0 0
        %734 = vmatprep.subr.bf16.mxu0 0
        %735 = vmatpush1.bf16.xpose.msra.mxu0 0
        %736 = vmatprep.subr.bf16.mxu0 0
        %737 = vmatpush1.bf16.xpose.msra.mxu0 0
        %738 = vmatprep.subr.bf16.mxu0 0
        %739 = vmatpush1.bf16.xpose.msra.mxu0 0
        %740 = vmatprep.subr.bf16.mxu0 0
        %741 = vmatpush1.bf16.xpose.msra.mxu0 0
        %742 = vmatprep.subr.bf16.mxu0 0
        %743 = vmatpush1.bf16.xpose.msra.mxu0 0
        %744 = vmatprep.subr.bf16.mxu0 0
        %745 = vmatpush1.bf16.xpose.msra.mxu0 0
        %746 = vmatprep.mubr.bf16.mxu0 0
        %747 = vmatmul.mubr.bf16.gmra.mrb[0].mxu0 %v709
        %v748 = vpop.f32.mrb[0].mxu0
        %v749 = vadd.f32 %v591, %v748
        %v750 = vpop.f32.mrb[0].mxu0
        %v751 = vpop.f32.mrb[0].mxu0
        %v752 = vpop.f32.mrb[0].mxu0
        %753 = vdwg.mxu0
        %v754 = vsel %vm592, %v749, -inf
        %755 = vmax.xlane.f32.xlu0 %v754
        %v756 = vpop.xlane.xlu0 %755
        %v757 = vsub.f32 %v749, %v756
        %v758 = vmul.f32 %v757, 1.442695
        %v759 = vpow.pop %v758
        %v760 = vsel %vm592, %v759, 0.0
        %761 = vadd.xlane.f32.xlu0 %v760
        %v762 = vpop.xlane.xlu0 %761
        %v763 = vrcp.pop %v762
        %v764 = vmul.f32 %v759, %v763
        %v765 = vpack.c.bf16 %v764, %v764
        %v767 = vunpack.c.l.b16 %v589
        %v768 = vpack.c.b16 %v767, %v767
        %769 = vrot.lane.b32.xlu0 %v768, 120
        %v770 = vpop.permute.xlu0 %769
        %v772 = vsel %vm592, %v765, 0
        %v775 = vsel %vm654, %v770, 0
        %777 = vmatprep.subr.bf16.mxu0 0
        %778 = vmatpush1.bf16.msra.mxu0 %v775
        %779 = vmatprep.subr.bf16.mxu0 0
        %780 = vmatpush1.bf16.msra.mxu0 0
        %781 = vmatprep.subr.bf16.mxu0 0
        %782 = vmatpush1.bf16.msra.mxu0 0
        %783 = vmatprep.subr.bf16.mxu0 0
        %784 = vmatpush1.bf16.msra.mxu0 0
        %785 = vmatprep.subr.bf16.mxu0 0
        %786 = vmatpush1.bf16.msra.mxu0 0
        %787 = vmatprep.subr.bf16.mxu0 0
        %788 = vmatpush1.bf16.msra.mxu0 0
        %789 = vmatprep.subr.bf16.mxu0 0
        %790 = vmatpush1.bf16.msra.mxu0 0
        %791 = vmatprep.subr.bf16.mxu0 0
        %792 = vmatpush1.bf16.msra.mxu0 0
        %793 = vmatprep.subr.bf16.mxu0 0
        %794 = vmatpush1.bf16.msra.mxu0 0
        %795 = vmatprep.subr.bf16.mxu0 0
        %796 = vmatpush1.bf16.msra.mxu0 0
        %797 = vmatprep.subr.bf16.mxu0 0
        %798 = vmatpush1.bf16.msra.mxu0 0
        %799 = vmatprep.subr.bf16.mxu0 0
        %800 = vmatpush1.bf16.msra.mxu0 0
        %801 = vmatprep.subr.bf16.mxu0 0
        %802 = vmatpush1.bf16.msra.mxu0 0
        %803 = vmatprep.subr.bf16.mxu0 0
        %804 = vmatpush1.bf16.msra.mxu0 0
        %805 = vmatprep.subr.bf16.mxu0 0
        %806 = vmatpush1.bf16.msra.mxu0 0
        %807 = vmatprep.subr.bf16.mxu0 0
        %808 = vmatpush1.bf16.msra.mxu0 0
        %809 = vmatprep.mubr.bf16.mxu0 0
        %810 = vmatmul.mubr.bf16.gmra.mrb[0].mxu0 %v772
        %v811 = vpop.f32.mrb[0].mxu0
        %v812 = vadd.f32 0.0, %v811
        %v813 = vpop.f32.mrb[0].mxu0
        %v814 = vpop.f32.mrb[0].mxu0
        %v815 = vpop.f32.mrb[0].mxu0
        %816 = vdwg.mxu0
        %v817 = vpack.c.bf16 %v812, %v812
        %v818 = vld [vmem:[%s6 + $0x4] sm:$0xf]
        %v820 = vsel %vm592, %v817, 0
        %v823 = vsel %vm654, %v818, 0
        %825 = vmatprep.subr.bf16.mxu0 0
        %826 = vmatpush1.bf16.msra.mxu0 %v823
        %827 = vmatprep.subr.bf16.mxu0 0
        %828 = vmatpush1.bf16.msra.mxu0 0
        %829 = vmatprep.subr.bf16.mxu0 0
        %830 = vmatpush1.bf16.msra.mxu0 0
        %831 = vmatprep.subr.bf16.mxu0 0
        %832 = vmatpush1.bf16.msra.mxu0 0
        %833 = vmatprep.subr.bf16.mxu0 0
        %834 = vmatpush1.bf16.msra.mxu0 0
        %835 = vmatprep.subr.bf16.mxu0 0
        %836 = vmatpush1.bf16.msra.mxu0 0
        %837 = vmatprep.subr.bf16.mxu0 0
        %838 = vmatpush1.bf16.msra.mxu0 0
        %839 = vmatprep.subr.bf16.mxu0 0
        %840 = vmatpush1.bf16.msra.mxu0 0
        %841 = vmatprep.subr.bf16.mxu0 0
        %842 = vmatpush1.bf16.msra.mxu0 0
        %843 = vmatprep.subr.bf16.mxu0 0
        %844 = vmatpush1.bf16.msra.mxu0 0
        %845 = vmatprep.subr.bf16.mxu0 0
        %846 = vmatpush1.bf16.msra.mxu0 0
        %847 = vmatprep.subr.bf16.mxu0 0
        %848 = vmatpush1.bf16.msra.mxu0 0
        %849 = vmatprep.subr.bf16.mxu0 0
        %850 = vmatpush1.bf16.msra.mxu0 0
        %851 = vmatprep.subr.bf16.mxu0 0
        %852 = vmatpush1.bf16.msra.mxu0 0
        %853 = vmatprep.subr.bf16.mxu0 0
        %854 = vmatpush1.bf16.msra.mxu0 0
        %855 = vmatprep.subr.bf16.mxu0 0
        %856 = vmatpush1.bf16.msra.mxu0 0
        %857 = vmatprep.mubr.bf16.mxu0 0
        %858 = vmatmul.mubr.bf16.gmra.mrb[0].mxu0 %v820
        %v859 = vpop.f32.mrb[0].mxu0
        %v860 = vadd.f32 0.0, %v859
        %v861 = vpop.f32.mrb[0].mxu0
        %v862 = vpop.f32.mrb[0].mxu0
        %v863 = vpop.f32.mrb[0].mxu0
        %864 = vdwg.mxu0
        %v866 = vsel %vm592, %v698, 0
        %v869 = vsel %vm654, %v699, 0
        %871 = vmatprep.subr.bf16.mxu0 0
        %872 = vmatpush1.bf16.msra.mxu0 %v869
        %873 = vmatprep.subr.bf16.mxu0 0
        %874 = vmatpush1.bf16.msra.mxu0 0
        %875 = vmatprep.subr.bf16.mxu0 0
        %876 = vmatpush1.bf16.msra.mxu0 0
        %877 = vmatprep.subr.bf16.mxu0 0
        %878 = vmatpush1.bf16.msra.mxu0 0
        %879 = vmatprep.subr.bf16.mxu0 0
        %880 = vmatpush1.bf16.msra.mxu0 0
        %881 = vmatprep.subr.bf16.mxu0 0
        %882 = vmatpush1.bf16.msra.mxu0 0
        %883 = vmatprep.subr.bf16.mxu0 0
        %884 = vmatpush1.bf16.msra.mxu0 0
        %885 = vmatprep.subr.bf16.mxu0 0
        %886 = vmatpush1.bf16.msra.mxu0 0
        %887 = vmatprep.subr.bf16.mxu0 0
        %888 = vmatpush1.bf16.msra.mxu0 0
        %889 = vmatprep.subr.bf16.mxu0 0
        %890 = vmatpush1.bf16.msra.mxu0 0
        %891 = vmatprep.subr.bf16.mxu0 0
        %892 = vmatpush1.bf16.msra.mxu0 0
        %893 = vmatprep.subr.bf16.mxu0 0
        %894 = vmatpush1.bf16.msra.mxu0 0
        %895 = vmatprep.subr.bf16.mxu0 0
        %896 = vmatpush1.bf16.msra.mxu0 0
        %897 = vmatprep.subr.bf16.mxu0 0
        %898 = vmatpush1.bf16.msra.mxu0 0
        %899 = vmatprep.subr.bf16.mxu0 0
        %900 = vmatpush1.bf16.msra.mxu0 0
        %901 = vmatprep.subr.bf16.mxu0 0
        %902 = vmatpush1.bf16.msra.mxu0 0
        %903 = vmatprep.mubr.bf16.mxu0 0
        %904 = vmatmul.mubr.bf16.gmra.mrb[0].mxu0 %v866
        %v905 = vpop.f32.mrb[0].mxu0
        %v906 = vadd.f32 %v860, %v905
        %v907 = vpop.f32.mrb[0].mxu0
        %v908 = vpop.f32.mrb[0].mxu0
        %v909 = vpop.f32.mrb[0].mxu0
        %910 = vdwg.mxu0
        %911 = vrot.lane.b32.xlu0 %v587, 112
        %v912 = vpop.permute.xlu0 %911
        %913 = vrot.lane.b32.xlu0 %v705, 112
        %v914 = vpop.permute.xlu0 %913
        %v916 = vsel %vm592, %v912, 0
        %v919 = vsel %vm592, %v914, 0
        %921 = vmatprep.subr.bf16.mxu0 0
        %922 = vmatpush1.bf16.xpose.msra.mxu0 %v919
        %923 = vmatprep.subr.bf16.mxu0 0
        %924 = vmatpush1.bf16.xpose.msra.mxu0 0
        %925 = vmatprep.subr.bf16.mxu0 0
        %926 = vmatpush1.bf16.xpose.msra.mxu0 0
        %927 = vmatprep.subr.bf16.mxu0 0
        %928 = vmatpush1.bf16.xpose.msra.mxu0 0
        %929 = vmatprep.subr.bf16.mxu0 0
        %930 = vmatpush1.bf16.xpose.msra.mxu0 0
        %931 = vmatprep.subr.bf16.mxu0 0
        %932 = vmatpush1.bf16.xpose.msra.mxu0 0
        %933 = vmatprep.subr.bf16.mxu0 0
        %934 = vmatpush1.bf16.xpose.msra.mxu0 0
        %935 = vmatprep.subr.bf16.mxu0 0
        %936 = vmatpush1.bf16.xpose.msra.mxu0 0
        %937 = vmatprep.subr.bf16.mxu0 0
        %938 = vmatpush1.bf16.xpose.msra.mxu0 0
        %939 = vmatprep.subr.bf16.mxu0 0
        %940 = vmatpush1.bf16.xpose.msra.mxu0 0
        %941 = vmatprep.subr.bf16.mxu0 0
        %942 = vmatpush1.bf16.xpose.msra.mxu0 0
        %943 = vmatprep.subr.bf16.mxu0 0
        %944 = vmatpush1.bf16.xpose.msra.mxu0 0
        %945 = vmatprep.subr.bf16.mxu0 0
        %946 = vmatpush1.bf16.xpose.msra.mxu0 0
        %947 = vmatprep.subr.bf16.mxu0 0
        %948 = vmatpush1.bf16.xpose.msra.mxu0 0
        %949 = vmatprep.subr.bf16.mxu0 0
        %950 = vmatpush1.bf16.xpose.msra.mxu0 0
        %951 = vmatprep.subr.bf16.mxu0 0
        %952 = vmatpush1.bf16.xpose.msra.mxu0 0
        %953 = vmatprep.mubr.bf16.mxu0 0
        %954 = vmatmul.mubr.bf16.gmra.mrb[0].mxu0 %v916
        %v955 = vpop.f32.mrb[0].mxu0
        %v956 = vadd.f32 %v591, %v955
        %v957 = vpop.f32.mrb[0].mxu0
        %v958 = vpop.f32.mrb[0].mxu0
        %v959 = vpop.f32.mrb[0].mxu0
        %960 = vdwg.mxu0
        %v961 = vsel %vm592, %v956, -inf
        %962 = vmax.xlane.f32.xlu0 %v961
        %v963 = vpop.xlane.xlu0 %962
        %v964 = vsub.f32 %v956, %v963
        %v965 = vmul.f32 %v964, 1.442695
        %v966 = vpow.pop %v965
        %v967 = vsel %vm592, %v966, 0.0
        %968 = vadd.xlane.f32.xlu0 %v967
        %v969 = vpop.xlane.xlu0 %968
        %v970 = vrcp.pop %v969
        %v971 = vmul.f32 %v966, %v970
        %v972 = vpack.c.bf16 %v971, %v971
        %973 = vrot.lane.b32.xlu0 %v768, 112
        %v974 = vpop.permute.xlu0 %973
        %v976 = vsel %vm592, %v972, 0
        %v979 = vsel %vm654, %v974, 0
        %981 = vmatprep.subr.bf16.mxu0 0
        %982 = vmatpush1.bf16.msra.mxu0 %v979
        %983 = vmatprep.subr.bf16.mxu0 0
        %984 = vmatpush1.bf16.msra.mxu0 0
        %985 = vmatprep.subr.bf16.mxu0 0
        %986 = vmatpush1.bf16.msra.mxu0 0
        %987 = vmatprep.subr.bf16.mxu0 0
        %988 = vmatpush1.bf16.msra.mxu0 0
        %989 = vmatprep.subr.bf16.mxu0 0
        %990 = vmatpush1.bf16.msra.mxu0 0
        %991 = vmatprep.subr.bf16.mxu0 0
        %992 = vmatpush1.bf16.msra.mxu0 0
        %993 = vmatprep.subr.bf16.mxu0 0
        %994 = vmatpush1.bf16.msra.mxu0 0
        %995 = vmatprep.subr.bf16.mxu0 0
        %996 = vmatpush1.bf16.msra.mxu0 0
        %997 = vmatprep.subr.bf16.mxu0 0
        %998 = vmatpush1.bf16.msra.mxu0 0
        %999 = vmatprep.subr.bf16.mxu0 0
        %1000 = vmatpush1.bf16.msra.mxu0 0
        %1001 = vmatprep.subr.bf16.mxu0 0
        %1002 = vmatpush1.bf16.msra.mxu0 0
        %1003 = vmatprep.subr.bf16.mxu0 0
        %1004 = vmatpush1.bf16.msra.mxu0 0
        %1005 = vmatprep.subr.bf16.mxu0 0
        %1006 = vmatpush1.bf16.msra.mxu0 0
        %1007 = vmatprep.subr.bf16.mxu0 0
        %1008 = vmatpush1.bf16.msra.mxu0 0
        %1009 = vmatprep.subr.bf16.mxu0 0
        %1010 = vmatpush1.bf16.msra.mxu0 0
        %1011 = vmatprep.subr.bf16.mxu0 0
        %1012 = vmatpush1.bf16.msra.mxu0 0
        %1013 = vmatprep.mubr.bf16.mxu0 0
        %1014 = vmatmul.mubr.bf16.gmra.mrb[0].mxu0 %v976
        %v1015 = vpop.f32.mrb[0].mxu0
        %v1016 = vadd.f32 0.0, %v1015
        %v1017 = vpop.f32.mrb[0].mxu0
        %v1018 = vpop.f32.mrb[0].mxu0
        %v1019 = vpop.f32.mrb[0].mxu0
        %1020 = vdwg.mxu0
        %v1021 = vpack.c.bf16 %v1016, %v1016
        %v1022 = vld [vmem:[%s6 + $0x8] sm:$0xf]
        %v1024 = vsel %vm592, %v1021, 0
        %v1027 = vsel %vm654, %v1022, 0
        %1029 = vmatprep.subr.bf16.mxu0 0
        %1030 = vmatpush1.bf16.msra.mxu0 %v1027
        %1031 = vmatprep.subr.bf16.mxu0 0
        %1032 = vmatpush1.bf16.msra.mxu0 0
        %1033 = vmatprep.subr.bf16.mxu0 0
        %1034 = vmatpush1.bf16.msra.mxu0 0
        %1035 = vmatprep.subr.bf16.mxu0 0
        %1036 = vmatpush1.bf16.msra.mxu0 0
        %1037 = vmatprep.subr.bf16.mxu0 0
        %1038 = vmatpush1.bf16.msra.mxu0 0
        %1039 = vmatprep.subr.bf16.mxu0 0
        %1040 = vmatpush1.bf16.msra.mxu0 0
        %1041 = vmatprep.subr.bf16.mxu0 0
        %1042 = vmatpush1.bf16.msra.mxu0 0
        %1043 = vmatprep.subr.bf16.mxu0 0
        %1044 = vmatpush1.bf16.msra.mxu0 0
        %1045 = vmatprep.subr.bf16.mxu0 0
        %1046 = vmatpush1.bf16.msra.mxu0 0
        %1047 = vmatprep.subr.bf16.mxu0 0
        %1048 = vmatpush1.bf16.msra.mxu0 0
        %1049 = vmatprep.subr.bf16.mxu0 0
        %1050 = vmatpush1.bf16.msra.mxu0 0
        %1051 = vmatprep.subr.bf16.mxu0 0
        %1052 = vmatpush1.bf16.msra.mxu0 0
        %1053 = vmatprep.subr.bf16.mxu0 0
        %1054 = vmatpush1.bf16.msra.mxu0 0
        %1055 = vmatprep.subr.bf16.mxu0 0
        %1056 = vmatpush1.bf16.msra.mxu0 0
        %1057 = vmatprep.subr.bf16.mxu0 0
        %1058 = vmatpush1.bf16.msra.mxu0 0
        %1059 = vmatprep.subr.bf16.mxu0 0
        %1060 = vmatpush1.bf16.msra.mxu0 0
        %1061 = vmatprep.mubr.bf16.mxu0 0
        %1062 = vmatmul.mubr.bf16.gmra.mrb[0].mxu0 %v1024
        %v1063 = vpop.f32.mrb[0].mxu0
        %v1064 = vadd.f32 0.0, %v1063
        %v1065 = vpop.f32.mrb[0].mxu0
        %v1066 = vpop.f32.mrb[0].mxu0
        %v1067 = vpop.f32.mrb[0].mxu0
        %1068 = vdwg.mxu0
        %v1069 = vadd.f32 %v906, %v1064
        %1070 = vrot.lane.b32.xlu0 %v587, 104
        %v1071 = vpop.permute.xlu0 %1070
        %1072 = vrot.lane.b32.xlu0 %v705, 104
        %v1073 = vpop.permute.xlu0 %1072
        %v1075 = vsel %vm592, %v1071, 0
        %v1078 = vsel %vm592, %v1073, 0
        %1080 = vmatprep.subr.bf16.mxu0 0
        %1081 = vmatpush1.bf16.xpose.msra.mxu0 %v1078
        %1082 = vmatprep.subr.bf16.mxu0 0
        %1083 = vmatpush1.bf16.xpose.msra.mxu0 0
        %1084 = vmatprep.subr.bf16.mxu0 0
        %1085 = vmatpush1.bf16.xpose.msra.mxu0 0
        %1086 = vmatprep.subr.bf16.mxu0 0
        %1087 = vmatpush1.bf16.xpose.msra.mxu0 0
        %1088 = vmatprep.subr.bf16.mxu0 0
        %1089 = vmatpush1.bf16.xpose.msra.mxu0 0
        %1090 = vmatprep.subr.bf16.mxu0 0
        %1091 = vmatpush1.bf16.xpose.msra.mxu0 0
        %1092 = vmatprep.subr.bf16.mxu0 0
        %1093 = vmatpush1.bf16.xpose.msra.mxu0 0
        %1094 = vmatprep.subr.bf16.mxu0 0
        %1095 = vmatpush1.bf16.xpose.msra.mxu0 0
        %1096 = vmatprep.subr.bf16.mxu0 0
        %1097 = vmatpush1.bf16.xpose.msra.mxu0 0
        %1098 = vmatprep.subr.bf16.mxu0 0
        %1099 = vmatpush1.bf16.xpose.msra.mxu0 0
        %1100 = vmatprep.subr.bf16.mxu0 0
        %1101 = vmatpush1.bf16.xpose.msra.mxu0 0
        %1102 = vmatprep.subr.bf16.mxu0 0
        %1103 = vmatpush1.bf16.xpose.msra.mxu0 0
        %1104 = vmatprep.subr.bf16.mxu0 0
        %1105 = vmatpush1.bf16.xpose.msra.mxu0 0
        %1106 = vmatprep.subr.bf16.mxu0 0
        %1107 = vmatpush1.bf16.xpose.msra.mxu0 0
        %1108 = vmatprep.subr.bf16.mxu0 0
        %1109 = vmatpush1.bf16.xpose.msra.mxu0 0
        %1110 = vmatprep.subr.bf16.mxu0 0
        %1111 = vmatpush1.bf16.xpose.msra.mxu0 0
        %1112 = vmatprep.mubr.bf16.mxu0 0
        %1113 = vmatmul.mubr.bf16.gmra.mrb[0].mxu0 %v1075
        %v1114 = vpop.f32.mrb[0].mxu0
        %v1115 = vadd.f32 %v591, %v1114
        %v1116 = vpop.f32.mrb[0].mxu0
        %v1117 = vpop.f32.mrb[0].mxu0
        %v1118 = vpop.f32.mrb[0].mxu0
        %1119 = vdwg.mxu0
        %v1120 = vsel %vm592, %v1115, -inf
        %1121 = vmax.xlane.f32.xlu0 %v1120
        %v1122 = vpop.xlane.xlu0 %1121
        %v1123 = vsub.f32 %v1115, %v1122
        %v1124 = vmul.f32 %v1123, 1.442695
        %v1125 = vpow.pop %v1124
        %v1126 = vsel %vm592, %v1125, 0.0
        %1127 = vadd.xlane.f32.xlu0 %v1126
        %v1128 = vpop.xlane.xlu0 %1127
        %v1129 = vrcp.pop %v1128
        %v1130 = vmul.f32 %v1125, %v1129
        %v1131 = vpack.c.bf16 %v1130, %v1130
        %1132 = vrot.lane.b32.xlu0 %v768, 104
        %v1133 = vpop.permute.xlu0 %1132
        %v1135 = vsel %vm592, %v1131, 0
        %v1138 = vsel %vm654, %v1133, 0
        %1140 = vmatprep.subr.bf16.mxu0 0
        %1141 = vmatpush1.bf16.msra.mxu0 %v1138
        %1142 = vmatprep.subr.bf16.mxu0 0
        %1143 = vmatpush1.bf16.msra.mxu0 0
        %1144 = vmatprep.subr.bf16.mxu0 0
        %1145 = vmatpush1.bf16.msra.mxu0 0
        %1146 = vmatprep.subr.bf16.mxu0 0
        %1147 = vmatpush1.bf16.msra.mxu0 0
        %1148 = vmatprep.subr.bf16.mxu0 0
        %1149 = vmatpush1.bf16.msra.mxu0 0
        %1150 = vmatprep.subr.bf16.mxu0 0
        %1151 = vmatpush1.bf16.msra.mxu0 0
        %1152 = vmatprep.subr.bf16.mxu0 0
        %1153 = vmatpush1.bf16.msra.mxu0 0
        %1154 = vmatprep.subr.bf16.mxu0 0
        %1155 = vmatpush1.bf16.msra.mxu0 0
        %1156 = vmatprep.subr.bf16.mxu0 0
        %1157 = vmatpush1.bf16.msra.mxu0 0
        %1158 = vmatprep.subr.bf16.mxu0 0
        %1159 = vmatpush1.bf16.msra.mxu0 0
        %1160 = vmatprep.subr.bf16.mxu0 0
        %1161 = vmatpush1.bf16.msra.mxu0 0
        %1162 = vmatprep.subr.bf16.mxu0 0
        %1163 = vmatpush1.bf16.msra.mxu0 0
        %1164 = vmatprep.subr.bf16.mxu0 0
        %1165 = vmatpush1.bf16.msra.mxu0 0
        %1166 = vmatprep.subr.bf16.mxu0 0
        %1167 = vmatpush1.bf16.msra.mxu0 0
        %1168 = vmatprep.subr.bf16.mxu0 0
        %1169 = vmatpush1.bf16.msra.mxu0 0
        %1170 = vmatprep.subr.bf16.mxu0 0
        %1171 = vmatpush1.bf16.msra.mxu0 0
        %1172 = vmatprep.mubr.bf16.mxu0 0
        %1173 = vmatmul.mubr.bf16.gmra.mrb[0].mxu0 %v1135
        %v1174 = vpop.f32.mrb[0].mxu0
        %v1175 = vadd.f32 0.0, %v1174
        %v1176 = vpop.f32.mrb[0].mxu0
        %v1177 = vpop.f32.mrb[0].mxu0
        %v1178 = vpop.f32.mrb[0].mxu0
        %1179 = vdwg.mxu0
        %v1180 = vpack.c.bf16 %v1175, %v1175
        %v1181 = vld [vmem:[%s6 + $0xc] sm:$0xf]
        %v1183 = vsel %vm592, %v1180, 0
        %v1186 = vsel %vm654, %v1181, 0
        %1188 = vmatprep.subr.bf16.mxu0 0
        %1189 = vmatpush1.bf16.msra.mxu0 %v1186
        %1190 = vmatprep.subr.bf16.mxu0 0
        %1191 = vmatpush1.bf16.msra.mxu0 0
        %1192 = vmatprep.subr.bf16.mxu0 0
        %1193 = vmatpush1.bf16.msra.mxu0 0
        %1194 = vmatprep.subr.bf16.mxu0 0
        %1195 = vmatpush1.bf16.msra.mxu0 0
        %1196 = vmatprep.subr.bf16.mxu0 0
        %1197 = vmatpush1.bf16.msra.mxu0 0
        %1198 = vmatprep.subr.bf16.mxu0 0
        %1199 = vmatpush1.bf16.msra.mxu0 0
        %1200 = vmatprep.subr.bf16.mxu0 0
        %1201 = vmatpush1.bf16.msra.mxu0 0
        %1202 = vmatprep.subr.bf16.mxu0 0
        %1203 = vmatpush1.bf16.msra.mxu0 0
        %1204 = vmatprep.subr.bf16.mxu0 0
        %1205 = vmatpush1.bf16.msra.mxu0 0
        %1206 = vmatprep.subr.bf16.mxu0 0
        %1207 = vmatpush1.bf16.msra.mxu0 0
        %1208 = vmatprep.subr.bf16.mxu0 0
        %1209 = vmatpush1.bf16.msra.mxu0 0
        %1210 = vmatprep.subr.bf16.mxu0 0
        %1211 = vmatpush1.bf16.msra.mxu0 0
        %1212 = vmatprep.subr.bf16.mxu0 0
        %1213 = vmatpush1.bf16.msra.mxu0 0
        %1214 = vmatprep.subr.bf16.mxu0 0
        %1215 = vmatpush1.bf16.msra.mxu0 0
        %1216 = vmatprep.subr.bf16.mxu0 0
        %1217 = vmatpush1.bf16.msra.mxu0 0
        %1218 = vmatprep.subr.bf16.mxu0 0
        %1219 = vmatpush1.bf16.msra.mxu0 0
        %1220 = vmatprep.mubr.bf16.mxu0 0
        %1221 = vmatmul.mubr.bf16.gmra.mrb[0].mxu0 %v1183
        %v1222 = vpop.f32.mrb[0].mxu0
        %v1223 = vadd.f32 0.0, %v1222
        %v1224 = vpop.f32.mrb[0].mxu0
        %v1225 = vpop.f32.mrb[0].mxu0
        %v1226 = vpop.f32.mrb[0].mxu0
        %1227 = vdwg.mxu0
        %v1228 = vadd.f32 %v1069, %v1223
        %v1229 = vld [vmem:[%s7] sm:$0x1]
        %v1231 = vlaneseq
        %v1232 = vshrl.u32 %v1231, 7
        %v1233 = vsub.s32 0, %v1232
        %v1234 = vrot.slane %v1229, %v1233
        %v1236 = vadd.f32 %v1228, %v1234
        %v1237 = vadd.f32 %v1236, %v518
        %v1238 = vsel %vm543, %v1237, 0.0
        %1239 = vadd.xlane.f32.xlu0 %v1238
        %v1240 = vpop.xlane.xlu0 %1239
        %v1241 = vrcp.pop 32.0
        %v1242 = vmul.f32 %v1240, %v1241
        %v1243 = vsub.f32 %v1237, %v1242
        %v1244 = vmul.f32 %v1243, %v1243
        %v1245 = vsel %vm543, %v1244, 0.0
        %1246 = vadd.xlane.f32.xlu0 %v1245
        %v1247 = vpop.xlane.xlu0 %1246
        %v1248 = vmul.f32 %v1247, %v1241
        %v1249 = vadd.f32 %v1248, 1e-05
        %v1250 = vrsqrt.pop %v1249
        %v1251 = vmul.f32 %v1243, %v1250
        %v1252 = vld [vmem:[%s8] sm:$0x1]
        %v1254 = vlaneseq
        %v1255 = vshrl.u32 %v1254, 7
        %v1256 = vsub.s32 0, %v1255
        %v1257 = vrot.slane %v1252, %v1256
        %v1259 = vmul.f32 %v1251, %v1257
        %v1260 = vld [vmem:[%s9] sm:$0x1]
        %v1262 = vlaneseq
        %v1263 = vshrl.u32 %v1262, 7
        %v1264 = vsub.s32 0, %v1263
        %v1265 = vrot.slane %v1260, %v1264
        %v1267 = vadd.f32 %v1259, %v1265
        %1268 = vst.msk [vmem:[%s516] sm:$0xff] %vm543, %v1267
        %s1269 = sand.u32 %s289, 1
        %s1270 = scalar_lea.sflag [#allocation4], %s1269
        %s1271 = sand.u32 %s289, 1
        %s1272 = smul.addr %s1271, 8
        %s1273 = scalar_lea.vmem [#allocation11], %s1272
        // Predicated region
        $region81: #{tpu_custom_call.1} parent=59 // pred_check
          %p1274 = pneg %p299
        $region82: #{tpu_custom_call.1} parent=59 // pred_check_branch
          %1276 = sbr.rel (%p1274) target = $region84
        $region83: #{tpu_custom_call.1} parent=59 // pred_region
          %s1278 = ssub.s32 128, 128
          %1279 = vsyncadd %s1270, %s1278
          %s1280 = sadd.s32 %s38, %s37
          %s1281 = smul.addr %s1280, 128
          %s1282 = scalar_lea.hbm %s10, %s1281
          %s1284 = sshll.u32 %s1273, 4
          %s1285 = int_to_ptr.vmem [resolvable:$true] %s1284
          %1287 = dma.vmem_to_hbm [thread:$0]  %s1285, 128, %s1282, %s1270
        $region84: #{tpu_custom_call.1} parent=59 // pred_fallthru
          _
      $region60: #{tpu_custom_call.1} parent=5 // pred_fallthru
        _
      %p1288 = scmp.le.s32.totalorder 2, %s28
      // Predicated region
      $region85: #{tpu_custom_call.1} parent=5 // pred_check
        %p1289 = pneg %p1288
      $region86: #{tpu_custom_call.1} parent=5 // pred_check_branch
        %1291 = sbr.rel (%p1289) target = $region88
      $region87: #{tpu_custom_call.1} parent=5 // pred_region
        %s1292 = ssub.s32 %s28, 2
        // Predicated region
        $region89: #{tpu_custom_call.1} parent=87 // pred_check
          %p1293 = pneg %p305
        $region90: #{tpu_custom_call.1} parent=87 // pred_check_branch
          %1295 = sbr.rel (%p1293) target = $region92
        $region91: #{tpu_custom_call.1} parent=87 // pred_region
          %s1296 = sand.u32 %s290, 1
          %s1297 = scalar_lea.sflag [#allocation4], %s1296
          %s1298 = sand.u32 %s290, 1
          %s1299 = smul.addr %s1298, 8
          %s1300 = scalar_lea.vmem [#allocation11], %s1299
          %1301 = dma.done %s1297, 128
        $region92: #{tpu_custom_call.1} parent=87 // pred_fallthru
          _
      $region88: #{tpu_custom_call.1} parent=5 // pred_fallthru
        _
    $region6: #{tpu_custom_call.1} parent=1 // loop_footer
      %s32 = sadd.s32 1, %s28
    $region7: #{tpu_custom_call.1} parent=1 // loop_footer_branch
      %27 = sbr.rel target = $region3
    $region8: #{tpu_custom_call.1} parent=1 // loop_exit
      _
    %1302 = vsyncpa [#allocation3], 1
    %s1303 = scalar_lea.sflag [#allocation3], 1
    %1304 = vsyncpa %s1303, 1
    %1305 = vsyncpa [#allocation6], 1
    %s1306 = scalar_lea.sflag [#allocation6], 1
    %1307 = vsyncpa %s1306, 1
    %1308 = vsyncpa [#allocation9], 1
    %s1309 = scalar_lea.sflag [#allocation9], 1
    %1310 = vsyncpa %s1309, 1
    %1311 = vsyncpa [#allocation4], 1
    %s1312 = scalar_lea.sflag [#allocation4], 1
    %1313 = vsyncpa %s1312, 1

</llo_original>
